<compile_context>
chip_gen: v6e
topology: v6e:2x2x1
jax: 0.10.0
libtpu: 0.0.40
codegen_flags: <defaults>
</compile_context>

<pallas_src>
import functools
import math

import jax
import jax.numpy as jnp
from jax import lax
from jax.experimental import pallas as pl
from jax.experimental.pallas import tpu as pltpu


def _mha_kernel(xf_ref, xq_ref, m_ref, pmq_ref,
                wq_ref, bq_ref, wkv_ref, bkv_ref, wfo_ref, bfo_ref, bf_ref,
                out_ref, *, num_head, dq, dk, dv, compute_dtype):
    """One grid step = (batch element, query tile); heads fused & unrolled."""
    x_full = xf_ref[0]                      # (C, Lp)  compute dtype
    x_q = xq_ref[0]                         # (C, TQ)  compute dtype
    minfo = m_ref[0]                        # (2, Lp)  f32
    pm = minfo[0:1, :]                      # (1, Lp)  key padding mask (0/1)
    logw = minfo[1:2, :]                    # (1, Lp)  log(mask+1e-6); -1e30 pads
    pm_q = pmq_ref[0]                       # (1, TQ)  query-side mask

    tq = x_q.shape[1]
    lp = x_full.shape[1]

    # Projections: low-precision MXU inputs, f32 accumulation, f32 bias add.
    # (1/sqrt(dq) is already folded into wq/bq host-side.)
    q_all = jnp.dot(wq_ref[...], x_q,
                    preferred_element_type=jnp.float32) + bq_ref[...]
    kv_all = jnp.dot(wkv_ref[...], x_full,
                     preferred_element_type=jnp.float32) + bkv_ref[...]

    ones_q = jnp.ones((1, tq), jnp.float32)   # hoisted (no per-head broadcast)
    ones_k = jnp.ones((1, lp), jnp.float32)

    heads = []
    for h in range(num_head):               # statically unrolled
        q = q_all[h * dq:(h + 1) * dq, :]                                  # (dq, TQ)
        k = kv_all[h * dk:(h + 1) * dk, :]                                 # (dk, Lp)
        v = kv_all[num_head * dk + h * dv:num_head * dk + (h + 1) * dv, :]  # (dv, Lp)

        # Fold the +log(mask+1e-6) bias into the QK matmul (extra ones channel
        # on q, logw channel on k) -- the MXU K-depth is nearly empty anyway.
        q_aug = jnp.concatenate([q, ones_q], axis=0).astype(compute_dtype)
        k_aug = jnp.concatenate([k, logw], axis=0).astype(compute_dtype)
        z = lax.dot_general(q_aug, k_aug, (((0,), (0,)), ((), ())),
                            preferred_element_type=jnp.float32)            # (TQ, Lp)

        z = z - jnp.max(z, axis=-1, keepdims=True)
        p = jnp.exp(z)                                                     # f32 EUP

        # Deferred softmax normalization: key mask folded into v (O(dv*L)),
        # ones row makes the same matmul emit the row-sum l as row dv,
        # already in the (1, TQ) layout we need (no transpose).
        v_aug = jnp.concatenate([v * pm, ones_k], axis=0).astype(compute_dtype)
        o_aug = lax.dot_general(v_aug, p.astype(compute_dtype),
                                (((1,), (1,)), ((), ())),
                                preferred_element_type=jnp.float32)        # (dv+1, TQ)
        inv_l = pl.reciprocal(o_aug[dv:dv + 1, :], approx=False)           # (1, TQ)
        heads.append(jnp.maximum(o_aug[:dv, :] * inv_l, 0.0))              # F.relu

    # Fused epilogue: wf[h] @ wo[h] precomputed host-side -> ONE mixing matmul.
    cat = jnp.concatenate(heads, axis=0).astype(compute_dtype)             # (H*dv, TQ)
    mixed = jnp.dot(wfo_ref[...], cat, preferred_element_type=jnp.float32)  # (v_dim, TQ)

    # Query-side masking commutes with the 1x1 convs for a 0/1 mask; the final
    # bias bf is NOT masked in the reference, so it is added after.
    out_ref[0] = (mixed + bfo_ref[...]) * pm_q + bf_ref[...]


def multi_head_att_layer(x1, mask, params, *, tq=256, use_bf16=True):
    """Forward of MultiHeadAttLayer (normal_att / encoder / eval dropout).

    x1:   (B, q_dim, L) float32
    mask: (B, 1, L)     float32 (binary)
    """
    wq, bq, wk, bk, wv, bv, wo, bo, wf, bf = (
        params["wq"], params["bq"], params["wk"], params["bk"],
        params["wv"], params["bv"], params["wo"], params["bo"],
        params["wf"], params["bf"])
    B, C, L = x1.shape
    num_head, dq, _ = wq.shape
    dk = wk.shape[1]
    dv = wv.shape[1]
    v_dim = wo.shape[1]
    assert dq == dk, "scalar_dot_att requires matching q/k channel dims"

    cdt = jnp.bfloat16 if use_bf16 else jnp.float32

    # ---- host-side weight fusion ----
    scale = jnp.float32(1.0 / math.sqrt(dq))
    w_q = (wq * scale).reshape(num_head * dq, C).astype(cdt)
    b_q = (bq * scale).reshape(num_head * dq, 1).astype(jnp.float32)
    w_kv = jnp.concatenate([wk.reshape(num_head * dk, C),
                            wv.reshape(num_head * dv, C)], axis=0).astype(cdt)
    b_kv = jnp.concatenate([bk.reshape(num_head * dk, 1),
                            bv.reshape(num_head * dv, 1)],
                           axis=0).astype(jnp.float32)
    # Per-head conv_out + final mixing conv folded algebraically.
    w_fo = jnp.concatenate([wf[h] @ wo[h] for h in range(num_head)],
                           axis=1).astype(cdt)                       # (v_dim, H*dv)
    b_fo = sum(wf[h] @ bo[h] for h in range(num_head)).astype(jnp.float32)
    bf_f = bf.astype(jnp.float32)

    # ---- pad L to a lane-dense multiple of 128 ----
    Lp = ((L + 127) // 128) * 128
    pad = Lp - L
    x_p = jnp.pad(x1, ((0, 0), (0, 0), (0, pad))).astype(cdt)
    pm = mask[:, 0:1, :].astype(jnp.float32)
    pm_p = jnp.pad(pm, ((0, 0), (0, 0), (0, pad)))                   # 0 in pad cols
    logw_p = jnp.pad(jnp.log(pm + 1e-6), ((0, 0), (0, 0), (0, pad)),
                     constant_values=-1e30)                          # kill pad keys
    minfo = jnp.concatenate([pm_p, logw_p], axis=1)                  # (B, 2, Lp)

    # ---- query tile size (multiple of 128 dividing Lp) ----
    tq = max(128, (int(tq) // 128) * 128)
    tq_ = min(tq, Lp)
    while Lp % tq_ != 0:
        tq_ -= 128
    nq = Lp // tq_

    kernel = functools.partial(_mha_kernel, num_head=num_head, dq=dq, dk=dk,
                               dv=dv, compute_dtype=cdt)

    # ---- explicit scoped-VMEM budget (blocks are double-buffered) ----
    bytes_c = 2 if use_bf16 else 4
    est = (tq_ * Lp * (8 + bytes_c)                          # z, p, p(cdt) per head
           + 2 * (C * Lp * bytes_c + C * tq_ * bytes_c
                  + 2 * Lp * 4 + tq_ * 4 + v_dim * tq_ * 4)  # pipelined blocks
           + (2 << 20))                                      # weights + headroom
    vmem_limit = int(min(56 * 2 ** 20, max(32 * 2 ** 20, 2 * est)))

    out = pl.pallas_call(
        kernel,
        out_shape=jax.ShapeDtypeStruct((B, v_dim, Lp), jnp.float32),
        grid_spec=pltpu.PrefetchScalarGridSpec(
            num_scalar_prefetch=0,
            grid=(B, nq),
            in_specs=[
                pl.BlockSpec((1, C, Lp), lambda b, q: (b, 0, 0)),    # x (full keys)
                pl.BlockSpec((1, C, tq_), lambda b, q: (b, 0, q)),   # x (query tile)
                pl.BlockSpec((1, 2, Lp), lambda b, q: (b, 0, 0)),    # key mask + logw
                pl.BlockSpec((1, 1, tq_), lambda b, q: (b, 0, q)),   # query mask tile
                # Weights: constant block index -> DMA'd once, VMEM-resident.
                pl.BlockSpec(w_q.shape, lambda b, q: (0, 0)),
                pl.BlockSpec(b_q.shape, lambda b, q: (0, 0)),
                pl.BlockSpec(w_kv.shape, lambda b, q: (0, 0)),
                pl.BlockSpec(b_kv.shape, lambda b, q: (0, 0)),
                pl.BlockSpec(w_fo.shape, lambda b, q: (0, 0)),
                pl.BlockSpec(b_fo.shape, lambda b, q: (0, 0)),
                pl.BlockSpec(bf_f.shape, lambda b, q: (0, 0)),
            ],
            out_specs=pl.BlockSpec((1, v_dim, tq_), lambda b, q: (b, 0, q)),
        ),
        compiler_params=pltpu.CompilerParams(
            dimension_semantics=("parallel", "parallel"),
            vmem_limit_bytes=vmem_limit),
    )(x_p, x_p, minfo, pm_p, w_q, b_q, w_kv, b_kv, w_fo, b_fo, bf_f)
    return out[:, :, :L]


# ----------------------------- reference (plain JAX) ------------------------

def reference_forward(x1, mask, params):
    wq, bq, wk, bk, wv, bv, wo, bo, wf, bf = (
        params["wq"], params["bq"], params["wk"], params["bk"],
        params["wv"], params["bv"], params["wo"], params["bo"],
        params["wf"], params["bf"])
    num_head = wq.shape[0]
    pm = mask[:, 0:1, :]                                   # (B,1,L)
    heads = []
    for h in range(num_head):
        q = jnp.einsum("oc,bcl->bol", wq[h], x1) + bq[h][None]
        k = jnp.einsum("oc,bcl->bol", wk[h], x1) + bk[h][None]
        v = jnp.einsum("oc,bcl->bol", wv[h], x1) + bv[h][None]
        c1 = q.shape[1]
        energy = jnp.einsum("bcl,bcm->blm", q, k) / jnp.sqrt(jnp.float32(c1))
        att = energy + jnp.log(pm + 1e-6)
        att = jax.nn.softmax(att, axis=-1)
        att = att * pm
        out = jnp.einsum("bcl,bml->bcm", v, att)           # v @ att^T
        out = jnp.maximum(out, 0.0)
        out = jnp.einsum("oc,bcl->bol", wo[h], out) + bo[h][None]
        out = out * pm
        heads.append(out)
    cat = jnp.concatenate(heads, axis=1)                   # (B, v_dim*H, L)
    wf_full = jnp.concatenate([wf[h] for h in range(num_head)], axis=1)
    return jnp.einsum("oc,bcl->bol", wf_full, cat) + bf[None]


# ----------------------------------- main ------------------------------------

if __name__ == "__main__":
    # Module hyper-params (small, consistent with the forward).
    B = 2
    q_dim = k_dim = v_dim = 16
    r1 = r2 = r3 = 2
    L = 16
    num_head = 2
    dq, dk, dv = q_dim // r1, k_dim // r2, v_dim // r3

    key = jax.random.PRNGKey(0)
    ks = jax.random.split(key, 12)
    s = 0.1
    params = {
        "wq": s * jax.random.normal(ks[0], (num_head, dq, q_dim), jnp.float32),
        "bq": s * jax.random.normal(ks[1], (num_head, dq, 1), jnp.float32),
        "wk": s * jax.random.normal(ks[2], (num_head, dk, k_dim), jnp.float32),
        "bk": s * jax.random.normal(ks[3], (num_head, dk, 1), jnp.float32),
        "wv": s * jax.random.normal(ks[4], (num_head, dv, v_dim), jnp.float32),
        "bv": s * jax.random.normal(ks[5], (num_head, dv, 1), jnp.float32),
        "wo": s * jax.random.normal(ks[6], (num_head, v_dim, dv), jnp.float32),
        "bo": s * jax.random.normal(ks[7], (num_head, v_dim, 1), jnp.float32),
        # Final Conv1d(v_dim*num_head -> v_dim) weight, split per-head block.
        "wf": s * jax.random.normal(ks[8], (num_head, v_dim, v_dim), jnp.float32),
        "bf": s * jax.random.normal(ks[9], (v_dim, 1), jnp.float32),
    }

    x1 = jax.random.normal(ks[10], (B, q_dim, L), jnp.float32)
    # Padding mask: batch 1 has its last 3 positions padded out.
    mask = jnp.ones((B, 1, L), jnp.float32)
    mask = mask.at[1, 0, L - 3:].set(0.0)

    ref = reference_forward(x1, mask, params)

    # Exact f32 path: tight numerical check of all the algebraic folds.
    out_f32 = jax.block_until_ready(
        multi_head_att_layer(x1, mask, params, use_bf16=False))
    assert out_f32.shape == (B, v_dim, L), out_f32.shape
    assert jnp.allclose(out_f32, ref, atol=1e-4, rtol=1e-4), (
        float(jnp.max(jnp.abs(out_f32 - ref))))

    # Default bf16-MXU path (f32 accumulation): relaxed tolerance.
    out_bf16 = jax.block_until_ready(
        multi_head_att_layer(x1, mask, params, use_bf16=True))
    assert jnp.allclose(out_bf16, ref, atol=2e-2, rtol=2e-2), (
        float(jnp.max(jnp.abs(out_bf16 - ref))))

    # Multi-query-tile path (grid = (B, nq) with nq > 1) on a longer sequence
    # with both padding-to-128 and in-range masked positions; exact f32 check.
    L2 = 300
    x2 = jax.random.normal(ks[11], (1, q_dim, L2), jnp.float32)
    mask2 = jnp.ones((1, 1, L2), jnp.float32).at[0, 0, 250:].set(0.0)
    ref2 = reference_forward(x2, mask2, params)
    out2 = jax.block_until_ready(
        multi_head_att_layer(x2, mask2, params, tq=128, use_bf16=False))
    assert out2.shape == (1, v_dim, L2), out2.shape
    assert jnp.allclose(out2, ref2, atol=1e-4, rtol=1e-4), (
        float(jnp.max(jnp.abs(out2 - ref2))))

    print("KERNEL_OK")
</pallas_src>

<mosaic_0001>
module attributes {stable_mosaic.version = 11 : i64} {
  func.func @_mha_kernel(%arg0: i32, %arg1: i32, %arg2: memref<1x16x128xf32, #tpu.memory_space<vmem>>, %arg3: memref<1x16x128xf32, #tpu.memory_space<vmem>>, %arg4: memref<1x2x128xf32, #tpu.memory_space<vmem>>, %arg5: memref<1x1x128xf32, #tpu.memory_space<vmem>>, %arg6: memref<16x16xf32, #tpu.memory_space<vmem>>, %arg7: memref<16x1xf32, #tpu.memory_space<vmem>>, %arg8: memref<32x16xf32, #tpu.memory_space<vmem>>, %arg9: memref<32x1xf32, #tpu.memory_space<vmem>>, %arg10: memref<16x16xf32, #tpu.memory_space<vmem>>, %arg11: memref<16x1xf32, #tpu.memory_space<vmem>>, %arg12: memref<16x1xf32, #tpu.memory_space<vmem>>, %arg13: memref<1x16x128xf32, #tpu.memory_space<vmem>>) attributes {dimension_semantics = [#tpu.dimension_semantics<parallel>, #tpu.dimension_semantics<parallel>], iteration_bounds = array<i64: 2, 1>, scalar_prefetch = 0 : i64, scratch_operands = 0 : i64, tpu.core_type = #tpu.core_type<tc>, window_params = [{transform_indices = @transform_0, window_bounds = array<i64: 1, 16, 128>}, {transform_indices = @transform_1, window_bounds = array<i64: 1, 16, 128>}, {transform_indices = @transform_2, window_bounds = array<i64: 1, 2, 128>}, {transform_indices = @transform_3, window_bounds = array<i64: 1, 1, 128>}, {pipeline_mode = #tpu.pipeline_mode<synchronous>, transform_indices = @transform_4, window_bounds = array<i64: 16, 16>}, {pipeline_mode = #tpu.pipeline_mode<synchronous>, transform_indices = @transform_5, window_bounds = array<i64: 16, 1>}, {pipeline_mode = #tpu.pipeline_mode<synchronous>, transform_indices = @transform_6, window_bounds = array<i64: 32, 16>}, {pipeline_mode = #tpu.pipeline_mode<synchronous>, transform_indices = @transform_7, window_bounds = array<i64: 32, 1>}, {pipeline_mode = #tpu.pipeline_mode<synchronous>, transform_indices = @transform_8, window_bounds = array<i64: 16, 16>}, {pipeline_mode = #tpu.pipeline_mode<synchronous>, transform_indices = @transform_9, window_bounds = array<i64: 16, 1>}, {pipeline_mode = #tpu.pipeline_mode<synchronous>, transform_indices = @transform_10, window_bounds = array<i64: 16, 1>}, {transform_indices = @transform_11, window_bounds = array<i64: 1, 16, 128>}]} {
    %c0 = arith.constant 0 : index
    %c0_0 = arith.constant 0 : index
    %c0_1 = arith.constant 0 : index
    %0 = vector.load %arg2[%c0, %c0_0, %c0_1] : memref<1x16x128xf32, #tpu.memory_space<vmem>>, vector<1x16x128xf32>
    %1 = vector.shape_cast %0 : vector<1x16x128xf32> to vector<16x128xf32>
    %c0_2 = arith.constant 0 : index
    %c0_3 = arith.constant 0 : index
    %c0_4 = arith.constant 0 : index
    %2 = vector.load %arg3[%c0_2, %c0_3, %c0_4] : memref<1x16x128xf32, #tpu.memory_space<vmem>>, vector<1x16x128xf32>
    %3 = vector.shape_cast %2 : vector<1x16x128xf32> to vector<16x128xf32>
    %c0_5 = arith.constant 0 : index
    %c0_6 = arith.constant 0 : index
    %c0_7 = arith.constant 0 : index
    %4 = vector.load %arg4[%c0_5, %c0_6, %c0_7] : memref<1x2x128xf32, #tpu.memory_space<vmem>>, vector<1x2x128xf32>
    %5 = vector.shape_cast %4 : vector<1x2x128xf32> to vector<2x128xf32>
    %6 = vector.extract_strided_slice %5 {offsets = [0, 0], sizes = [1, 128], strides = [1, 1]} : vector<2x128xf32> to vector<1x128xf32>
    %7 = vector.extract_strided_slice %5 {offsets = [1, 0], sizes = [1, 128], strides = [1, 1]} : vector<2x128xf32> to vector<1x128xf32>
    %c0_8 = arith.constant 0 : index
    %c0_9 = arith.constant 0 : index
    %c0_10 = arith.constant 0 : index
    %8 = vector.load %arg5[%c0_8, %c0_9, %c0_10] : memref<1x1x128xf32, #tpu.memory_space<vmem>>, vector<1x1x128xf32>
    %9 = vector.shape_cast %8 : vector<1x1x128xf32> to vector<1x128xf32>
    %c0_11 = arith.constant 0 : index
    %c0_12 = arith.constant 0 : index
    %10 = vector.load %arg6[%c0_11, %c0_12] : memref<16x16xf32, #tpu.memory_space<vmem>>, vector<16x16xf32>
    %cst = arith.constant dense<0.000000e+00> : vector<16x128xf32>
    %11 = tpu.matmul %10, %3, %cst {dimension_numbers = #tpu.dot_dimension_numbers<[1], [0], [0], [1], [0, 0, 1, 1], [], []>} : vector<16x16xf32>, vector<16x128xf32>, vector<16x128xf32> -> vector<16x128xf32>
    %c0_13 = arith.constant 0 : index
    %c0_14 = arith.constant 0 : index
    %12 = vector.load %arg7[%c0_13, %c0_14] : memref<16x1xf32, #tpu.memory_space<vmem>>, vector<16x1xf32>
    %13 = vector.broadcast %12 : vector<16x1xf32> to vector<16x128xf32>
    %14 = arith.addf %11, %13 : vector<16x128xf32>
    %c0_15 = arith.constant 0 : index
    %c0_16 = arith.constant 0 : index
    %15 = vector.load %arg8[%c0_15, %c0_16] : memref<32x16xf32, #tpu.memory_space<vmem>>, vector<32x16xf32>
    %cst_17 = arith.constant dense<0.000000e+00> : vector<32x128xf32>
    %16 = tpu.matmul %15, %1, %cst_17 {dimension_numbers = #tpu.dot_dimension_numbers<[1], [0], [0], [1], [0, 0, 1, 1], [], []>} : vector<32x16xf32>, vector<16x128xf32>, vector<32x128xf32> -> vector<32x128xf32>
    %c0_18 = arith.constant 0 : index
    %c0_19 = arith.constant 0 : index
    %17 = vector.load %arg9[%c0_18, %c0_19] : memref<32x1xf32, #tpu.memory_space<vmem>>, vector<32x1xf32>
    %18 = vector.broadcast %17 : vector<32x1xf32> to vector<32x128xf32>
    %19 = arith.addf %16, %18 : vector<32x128xf32>
    %cst_20 = arith.constant 1.000000e+00 : f32
    %20 = vector.broadcast %cst_20 : f32 to vector<1x128xf32>
    %cst_21 = arith.constant 1.000000e+00 : f32
    %21 = vector.broadcast %cst_21 : f32 to vector<1x128xf32>
    %22 = vector.extract_strided_slice %14 {offsets = [0, 0], sizes = [8, 128], strides = [1, 1]} : vector<16x128xf32> to vector<8x128xf32>
    %23 = vector.extract_strided_slice %19 {offsets = [0, 0], sizes = [8, 128], strides = [1, 1]} : vector<32x128xf32> to vector<8x128xf32>
    %24 = vector.extract_strided_slice %19 {offsets = [16, 0], sizes = [8, 128], strides = [1, 1]} : vector<32x128xf32> to vector<8x128xf32>
    %25 = tpu.concatenate %22, %20 in 0 : vector<8x128xf32>, vector<1x128xf32> -> vector<9x128xf32>
    %26 = tpu.concatenate %23, %7 in 0 : vector<8x128xf32>, vector<1x128xf32> -> vector<9x128xf32>
    %cst_22 = arith.constant dense<0.000000e+00> : vector<128x128xf32>
    %27 = tpu.matmul %25, %26, %cst_22 {dimension_numbers = #tpu.dot_dimension_numbers<[0], [0], [1], [1], [0, 1, 1, 1], [], []>} : vector<9x128xf32>, vector<9x128xf32>, vector<128x128xf32> -> vector<128x128xf32>
    %cst_23 = arith.constant dense<0xFF800000> : vector<128xf32>
    %28 = vector.multi_reduction <maximumf>, %27, %cst_23 [1] : vector<128x128xf32> to vector<128xf32>
    %29 = vector.shape_cast %28 : vector<128xf32> to vector<128x1xf32>
    %30 = vector.broadcast %29 : vector<128x1xf32> to vector<128x128xf32>
    %31 = arith.subf %27, %30 : vector<128x128xf32>
    %32 = math.exp %31 : vector<128x128xf32>
    %33 = vector.broadcast %6 : vector<1x128xf32> to vector<8x128xf32>
    %34 = arith.mulf %24, %33 : vector<8x128xf32>
    %35 = tpu.concatenate %34, %21 in 0 : vector<8x128xf32>, vector<1x128xf32> -> vector<9x128xf32>
    %cst_24 = arith.constant dense<0.000000e+00> : vector<9x128xf32>
    %36 = tpu.matmul %35, %32, %cst_24 {dimension_numbers = #tpu.dot_dimension_numbers<[1], [1], [0], [0], [0, 0, 1, 0], [], []>} : vector<9x128xf32>, vector<128x128xf32>, vector<9x128xf32> -> vector<9x128xf32>
    %37 = vector.extract_strided_slice %36 {offsets = [8, 0], sizes = [1, 128], strides = [1, 1]} : vector<9x128xf32> to vector<1x128xf32>
    %38 = tpu.reciprocal %37 : vector<1x128xf32> -> vector<1x128xf32>
    %39 = vector.extract_strided_slice %36 {offsets = [0, 0], sizes = [8, 128], strides = [1, 1]} : vector<9x128xf32> to vector<8x128xf32>
    %40 = vector.broadcast %38 : vector<1x128xf32> to vector<8x128xf32>
    %41 = arith.mulf %39, %40 : vector<8x128xf32>
    %cst_25 = arith.constant 0.000000e+00 : f32
    %42 = vector.broadcast %cst_25 : f32 to vector<8x128xf32>
    %43 = arith.maximumf %41, %42 : vector<8x128xf32>
    %44 = vector.extract_strided_slice %14 {offsets = [8, 0], sizes = [8, 128], strides = [1, 1]} : vector<16x128xf32> to vector<8x128xf32>
    %45 = vector.extract_strided_slice %19 {offsets = [8, 0], sizes = [8, 128], strides = [1, 1]} : vector<32x128xf32> to vector<8x128xf32>
    %46 = vector.extract_strided_slice %19 {offsets = [24, 0], sizes = [8, 128], strides = [1, 1]} : vector<32x128xf32> to vector<8x128xf32>
    %47 = tpu.concatenate %44, %20 in 0 : vector<8x128xf32>, vector<1x128xf32> -> vector<9x128xf32>
    %48 = tpu.concatenate %45, %7 in 0 : vector<8x128xf32>, vector<1x128xf32> -> vector<9x128xf32>
    %cst_26 = arith.constant dense<0.000000e+00> : vector<128x128xf32>
    %49 = tpu.matmul %47, %48, %cst_26 {dimension_numbers = #tpu.dot_dimension_numbers<[0], [0], [1], [1], [0, 1, 1, 1], [], []>} : vector<9x128xf32>, vector<9x128xf32>, vector<128x128xf32> -> vector<128x128xf32>
    %cst_27 = arith.constant dense<0xFF800000> : vector<128xf32>
    %50 = vector.multi_reduction <maximumf>, %49, %cst_27 [1] : vector<128x128xf32> to vector<128xf32>
    %51 = vector.shape_cast %50 : vector<128xf32> to vector<128x1xf32>
    %52 = vector.broadcast %51 : vector<128x1xf32> to vector<128x128xf32>
    %53 = arith.subf %49, %52 : vector<128x128xf32>
    %54 = math.exp %53 : vector<128x128xf32>
    %55 = vector.broadcast %6 : vector<1x128xf32> to vector<8x128xf32>
    %56 = arith.mulf %46, %55 : vector<8x128xf32>
    %57 = tpu.concatenate %56, %21 in 0 : vector<8x128xf32>, vector<1x128xf32> -> vector<9x128xf32>
    %cst_28 = arith.constant dense<0.000000e+00> : vector<9x128xf32>
    %58 = tpu.matmul %57, %54, %cst_28 {dimension_numbers = #tpu.dot_dimension_numbers<[1], [1], [0], [0], [0, 0, 1, 0], [], []>} : vector<9x128xf32>, vector<128x128xf32>, vector<9x128xf32> -> vector<9x128xf32>
    %59 = vector.extract_strided_slice %58 {offsets = [8, 0], sizes = [1, 128], strides = [1, 1]} : vector<9x128xf32> to vector<1x128xf32>
    %60 = tpu.reciprocal %59 : vector<1x128xf32> -> vector<1x128xf32>
    %61 = vector.extract_strided_slice %58 {offsets = [0, 0], sizes = [8, 128], strides = [1, 1]} : vector<9x128xf32> to vector<8x128xf32>
    %62 = vector.broadcast %60 : vector<1x128xf32> to vector<8x128xf32>
    %63 = arith.mulf %61, %62 : vector<8x128xf32>
    %cst_29 = arith.constant 0.000000e+00 : f32
    %64 = vector.broadcast %cst_29 : f32 to vector<8x128xf32>
    %65 = arith.maximumf %63, %64 : vector<8x128xf32>
    %66 = tpu.concatenate %43, %65 in 0 : vector<8x128xf32>, vector<8x128xf32> -> vector<16x128xf32>
    %c0_30 = arith.constant 0 : index
    %c0_31 = arith.constant 0 : index
    %67 = vector.load %arg10[%c0_30, %c0_31] : memref<16x16xf32, #tpu.memory_space<vmem>>, vector<16x16xf32>
    %cst_32 = arith.constant dense<0.000000e+00> : vector<16x128xf32>
    %68 = tpu.matmul %67, %66, %cst_32 {dimension_numbers = #tpu.dot_dimension_numbers<[1], [0], [0], [1], [0, 0, 1, 1], [], []>} : vector<16x16xf32>, vector<16x128xf32>, vector<16x128xf32> -> vector<16x128xf32>
    %c0_33 = arith.constant 0 : index
    %c0_34 = arith.constant 0 : index
    %69 = vector.load %arg11[%c0_33, %c0_34] : memref<16x1xf32, #tpu.memory_space<vmem>>, vector<16x1xf32>
    %70 = vector.broadcast %69 : vector<16x1xf32> to vector<16x128xf32>
    %71 = arith.addf %68, %70 : vector<16x128xf32>
    %72 = vector.broadcast %9 : vector<1x128xf32> to vector<16x128xf32>
    %73 = arith.mulf %71, %72 : vector<16x128xf32>
    %c0_35 = arith.constant 0 : index
    %c0_36 = arith.constant 0 : index
    %74 = vector.load %arg12[%c0_35, %c0_36] : memref<16x1xf32, #tpu.memory_space<vmem>>, vector<16x1xf32>
    %75 = vector.broadcast %74 : vector<16x1xf32> to vector<16x128xf32>
    %76 = arith.addf %73, %75 : vector<16x128xf32>
    %c0_37 = arith.constant 0 : index
    %c0_38 = arith.constant 0 : index
    %c0_39 = arith.constant 0 : index
    %77 = vector.load %arg13[%c0_37, %c0_38, %c0_39] : memref<1x16x128xf32, #tpu.memory_space<vmem>>, vector<1x16x128xf32>
    %78 = vector.shape_cast %77 : vector<1x16x128xf32> to vector<16x128xf32>
    %79 = vector.shape_cast %76 : vector<16x128xf32> to vector<1x16x128xf32>
    tpu.vector_store %arg13[%c0_37, %c0_38, %c0_39], %79 {strides = array<i32>} : memref<1x16x128xf32, #tpu.memory_space<vmem>>, vector<1x16x128xf32>,
    return
  }
  func.func @transform_0(%arg0: i32, %arg1: i32) -> (i32, i32, i32) {
    %c0_i32 = arith.constant 0 : i32
    %c0_i32_0 = arith.constant 0 : i32
    %c0_i32_1 = arith.constant 0 : i32
    return %arg0, %c0_i32, %c0_i32_0 : i32, i32, i32
  }
  func.func @transform_1(%arg0: i32, %arg1: i32) -> (i32, i32, i32) {
    %c0_i32 = arith.constant 0 : i32
    %c0_i32_0 = arith.constant 0 : i32
    return %arg0, %c0_i32, %arg1 : i32, i32, i32
  }
  func.func @transform_2(%arg0: i32, %arg1: i32) -> (i32, i32, i32) {
    %c0_i32 = arith.constant 0 : i32
    %c0_i32_0 = arith.constant 0 : i32
    %c0_i32_1 = arith.constant 0 : i32
    return %arg0, %c0_i32, %c0_i32_0 : i32, i32, i32
  }
  func.func @transform_3(%arg0: i32, %arg1: i32) -> (i32, i32, i32) {
    %c0_i32 = arith.constant 0 : i32
    %c0_i32_0 = arith.constant 0 : i32
    return %arg0, %c0_i32, %arg1 : i32, i32, i32
  }
  func.func @transform_4(%arg0: i32, %arg1: i32) -> (i32, i32) {
    %c0_i32 = arith.constant 0 : i32
    %c0_i32_0 = arith.constant 0 : i32
    %c0_i32_1 = arith.constant 0 : i32
    return %c0_i32, %c0_i32_0 : i32, i32
  }
  func.func @transform_5(%arg0: i32, %arg1: i32) -> (i32, i32) {
    %c0_i32 = arith.constant 0 : i32
    %c0_i32_0 = arith.constant 0 : i32
    %c0_i32_1 = arith.constant 0 : i32
    return %c0_i32, %c0_i32_0 : i32, i32
  }
  func.func @transform_6(%arg0: i32, %arg1: i32) -> (i32, i32) {
    %c0_i32 = arith.constant 0 : i32
    %c0_i32_0 = arith.constant 0 : i32
    %c0_i32_1 = arith.constant 0 : i32
    return %c0_i32, %c0_i32_0 : i32, i32
  }
  func.func @transform_7(%arg0: i32, %arg1: i32) -> (i32, i32) {
    %c0_i32 = arith.constant 0 : i32
    %c0_i32_0 = arith.constant 0 : i32
    %c0_i32_1 = arith.constant 0 : i32
    return %c0_i32, %c0_i32_0 : i32, i32
  }
  func.func @transform_8(%arg0: i32, %arg1: i32) -> (i32, i32) {
    %c0_i32 = arith.constant 0 : i32
    %c0_i32_0 = arith.constant 0 : i32
    %c0_i32_1 = arith.constant 0 : i32
    return %c0_i32, %c0_i32_0 : i32, i32
  }
  func.func @transform_9(%arg0: i32, %arg1: i32) -> (i32, i32) {
    %c0_i32 = arith.constant 0 : i32
    %c0_i32_0 = arith.constant 0 : i32
    %c0_i32_1 = arith.constant 0 : i32
    return %c0_i32, %c0_i32_0 : i32, i32
  }
  func.func @transform_10(%arg0: i32, %arg1: i32) -> (i32, i32) {
    %c0_i32 = arith.constant 0 : i32
    %c0_i32_0 = arith.constant 0 : i32
    %c0_i32_1 = arith.constant 0 : i32
    return %c0_i32, %c0_i32_0 : i32, i32
  }
  func.func @transform_11(%arg0: i32, %arg1: i32) -> (i32, i32, i32) {
    %c0_i32 = arith.constant 0 : i32
    %c0_i32_0 = arith.constant 0 : i32
    return %arg0, %c0_i32, %arg1 : i32, i32, i32
  }
}

</mosaic_0001>

<llo_original>
// kernel: tpu_custom_call.1
$region0: #{tpu_custom_call.1}
  #allocation0 [shape = 'u32[]', space=smem, size = 0x4, offset = 0x4, fixed_abs, tag = 'smem constant byte address 0x4 - core index']
  #allocation1 [shape = 'u32[144,128]{1,0:T(1,128)}', space=vmem, size = 0x12000, scoped, tag = 'internal scratch']
  %s0 = inlined_call_operand.vmem [shape: f32[2,16,128], index: 0, kind: input, shape index: {}]
  %s1 = inlined_call_operand.vmem [shape: f32[2,16,128], index: 1, kind: input, shape index: {}]
  %s2 = inlined_call_operand.vmem [shape: f32[2,2,128], index: 2, kind: input, shape index: {}]
  %s3 = inlined_call_operand.vmem [shape: f32[2,1,128], index: 3, kind: input, shape index: {}]
  %s4 = inlined_call_operand.vmem [shape: f32[16,16], index: 4, kind: input, shape index: {}]
  %s5 = inlined_call_operand.vmem [shape: f32[16,1], index: 5, kind: input, shape index: {}]
  %s6 = inlined_call_operand.vmem [shape: f32[32,16], index: 6, kind: input, shape index: {}]
  %s7 = inlined_call_operand.vmem [shape: f32[32,1], index: 7, kind: input, shape index: {}]
  %s8 = inlined_call_operand.vmem [shape: f32[16,16], index: 8, kind: input, shape index: {}]
  %s9 = inlined_call_operand.vmem [shape: f32[16,1], index: 9, kind: input, shape index: {}]
  %s10 = inlined_call_operand.vmem [shape: f32[16,1], index: 10, kind: input, shape index: {}]
  %s11 = inlined_call_operand.hbm [shape: f32[2,16,128], index: 11, kind: output, shape index: {}]
  %s12 = sld [smem:[#allocation0]]
  $region77: #{tpu_custom_call.1} parent=0
    _
  %s14 = ssub.s32 1, %s12
  %s15 = scalar_select 0, %s14, %s12
  $region1: #{tpu_custom_call.1} parent=0
    #allocation2 [shape = 'u8[16384]{0}', space=vmem, size = 0x4000, scoped, tag = 'output window, operand 0']
    #allocation3 [shape = 's32[2]{0}', space=sflag, size = 0x8, scoped, tag = 'scoped memory for tpu_custom_call.1']
    %16 = vsyncpa [#allocation3], 0
    %s17 = scalar_lea.sflag [#allocation3], 1
    %18 = vsyncpa %s17, 0
    loop: start=0, step=1, limit=4
    $region2: #{tpu_custom_call.1} parent=1 // loop_pre_header
      _
    $region3: #{tpu_custom_call.1} parent=1 // loop_header
      %s20 = sphi 0, %s24
      %p21 = scmp.ge.s32.totalorder %s20, 4
      %s27 = sphi 0, %s39
      %s28 = sphi 0, %s35
      %s29 = sphi 0, %s27
      %s30 = sphi 0, %s28
      %s31 = sphi 0, %s29
      %s32 = sphi 0, %s30
      %s42 = sphi 0, %s44
      %s45 = sphi 0, %s42
      %s46 = sphi 0, %s45
      %s62 = sphi 0, %s46
      %s70 = sphi 0, %s72
      %s73 = sphi 0, %s70
      %s74 = sphi 0, %s73
      %s90 = sphi 0, %s74
      %s96 = sphi 0, %s98
      %s99 = sphi 0, %s96
      %s100 = sphi 0, %s99
      %s116 = sphi 0, %s100
      %s124 = sphi 0, %s126
      %s127 = sphi 0, %s124
      %s128 = sphi 0, %s127
      %s144 = sphi 0, %s128
      %s148 = sphi 0, %s148
      %s150 = sphi 0, %s148
      %s151 = sphi 0, %s150
      %s165 = sphi 0, %s151
      %s169 = sphi 0, %s169
      %s171 = sphi 0, %s169
      %s172 = sphi 0, %s171
      %s186 = sphi 0, %s172
      %s190 = sphi 0, %s190
      %s192 = sphi 0, %s190
      %s193 = sphi 0, %s192
      %s207 = sphi 0, %s193
      %s211 = sphi 0, %s211
      %s213 = sphi 0, %s211
      %s214 = sphi 0, %s213
      %s228 = sphi 0, %s214
      %s232 = sphi 0, %s232
      %s234 = sphi 0, %s232
      %s235 = sphi 0, %s234
      %s249 = sphi 0, %s235
      %s253 = sphi 0, %s253
      %s255 = sphi 0, %s253
      %s256 = sphi 0, %s255
      %s270 = sphi 0, %s256
      %s274 = sphi 0, %s274
      %s276 = sphi 0, %s274
      %s277 = sphi 0, %s276
      %s291 = sphi 0, %s277
      %s299 = sphi 0, %s301
      %s302 = sphi 0, %s299
      %s303 = sphi 0, %s302
      %s319 = sphi 0, %s303
    $region4: #{tpu_custom_call.1} parent=1 // loop_header_branch
      %23 = sbr.rel (%p21) target = $region8
    $region5: #{tpu_custom_call.1} parent=1 // loop_body
      %s25 = ssub.s32 %s20, 1
      %s26 = ssub.s32 %s20, 2
      %s33 = sadd.s32 1, %s28
      %p34 = scmp.ge.s32.totalorder %s33, 1
      %s35 = scalar_select %p34, 0, %s33
      %s36 = sadd.s32 1, %s27
      %s37 = scalar_select %p34, %s36, %s27
      %p38 = scmp.ge.s32.totalorder %s37, 2
      %s39 = scalar_select %p38, 0, %s37
      %s40 = ssub.s32 %s27, %s39
      %p41 = scmp.eq.s32.totalorder %s40, 0
      %s43 = sadd.s32 %s42, 1
      %s44 = scalar_select %p41, %s42, %s43
      %p47 = pneg %p41
      %p48 = scmp.eq.s32.totalorder %s20, 1
      %p49 = por %p47, %p48
      %p50 = scmp.ne.s32.totalorder %s42, %s45
      %p51 = scmp.eq.s32.totalorder %s20, 0
      %p52 = por %p50, %p51
      %p53 = scmp.ne.s32.totalorder %s42, %s45
      %p54 = scmp.eq.s32.totalorder %s25, 1
      %p55 = por %p53, %p54
      %p56 = scmp.ne.s32.totalorder %s45, %s46
      %p57 = scmp.eq.s32.totalorder %s25, 0
      %p58 = por %p56, %p57
      %p59 = scmp.ne.s32.totalorder %s45, %s46
      %p60 = scmp.eq.s32.totalorder %s26, 1
      %p61 = por %p59, %p60
      %p63 = scmp.ne.s32.totalorder %s46, %s62
      %p64 = scmp.eq.s32.totalorder %s26, 0
      %p65 = por %p63, %p64
      %s66 = ssub.s32 %s27, %s39
      %s67 = ssub.s32 %s28, %s35
      %s68 = sor.u32 %s66, %s67
      %p69 = scmp.eq.s32.totalorder %s68, 0
      %s71 = sadd.s32 %s70, 1
      %s72 = scalar_select %p69, %s70, %s71
      %p75 = pneg %p69
      %p76 = scmp.eq.s32.totalorder %s20, 1
      %p77 = por %p75, %p76
      %p78 = scmp.ne.s32.totalorder %s70, %s73
      %p79 = scmp.eq.s32.totalorder %s20, 0
      %p80 = por %p78, %p79
      %p81 = scmp.ne.s32.totalorder %s70, %s73
      %p82 = scmp.eq.s32.totalorder %s25, 1
      %p83 = por %p81, %p82
      %p84 = scmp.ne.s32.totalorder %s73, %s74
      %p85 = scmp.eq.s32.totalorder %s25, 0
      %p86 = por %p84, %p85
      %p87 = scmp.ne.s32.totalorder %s73, %s74
      %p88 = scmp.eq.s32.totalorder %s26, 1
      %p89 = por %p87, %p88
      %p91 = scmp.ne.s32.totalorder %s74, %s90
      %p92 = scmp.eq.s32.totalorder %s26, 0
      %p93 = por %p91, %p92
      %s94 = ssub.s32 %s27, %s39
      %p95 = scmp.eq.s32.totalorder %s94, 0
      %s97 = sadd.s32 %s96, 1
      %s98 = scalar_select %p95, %s96, %s97
      %p101 = pneg %p95
      %p102 = scmp.eq.s32.totalorder %s20, 1
      %p103 = por %p101, %p102
      %p104 = scmp.ne.s32.totalorder %s96, %s99
      %p105 = scmp.eq.s32.totalorder %s20, 0
      %p106 = por %p104, %p105
      %p107 = scmp.ne.s32.totalorder %s96, %s99
      %p108 = scmp.eq.s32.totalorder %s25, 1
      %p109 = por %p107, %p108
      %p110 = scmp.ne.s32.totalorder %s99, %s100
      %p111 = scmp.eq.s32.totalorder %s25, 0
      %p112 = por %p110, %p111
      %p113 = scmp.ne.s32.totalorder %s99, %s100
      %p114 = scmp.eq.s32.totalorder %s26, 1
      %p115 = por %p113, %p114
      %p117 = scmp.ne.s32.totalorder %s100, %s116
      %p118 = scmp.eq.s32.totalorder %s26, 0
      %p119 = por %p117, %p118
      %s120 = ssub.s32 %s27, %s39
      %s121 = ssub.s32 %s28, %s35
      %s122 = sor.u32 %s120, %s121
      %p123 = scmp.eq.s32.totalorder %s122, 0
      %s125 = sadd.s32 %s124, 1
      %s126 = scalar_select %p123, %s124, %s125
      %p129 = pneg %p123
      %p130 = scmp.eq.s32.totalorder %s20, 1
      %p131 = por %p129, %p130
      %p132 = scmp.ne.s32.totalorder %s124, %s127
      %p133 = scmp.eq.s32.totalorder %s20, 0
      %p134 = por %p132, %p133
      %p135 = scmp.ne.s32.totalorder %s124, %s127
      %p136 = scmp.eq.s32.totalorder %s25, 1
      %p137 = por %p135, %p136
      %p138 = scmp.ne.s32.totalorder %s127, %s128
      %p139 = scmp.eq.s32.totalorder %s25, 0
      %p140 = por %p138, %p139
      %p141 = scmp.ne.s32.totalorder %s127, %s128
      %p142 = scmp.eq.s32.totalorder %s26, 1
      %p143 = por %p141, %p142
      %p145 = scmp.ne.s32.totalorder %s128, %s144
      %p146 = scmp.eq.s32.totalorder %s26, 0
      %p147 = por %p145, %p146
      %s149 = sadd.s32 %s148, 1
      %p152 = scmp.eq.s32.totalorder %s20, 1
      %p153 = scmp.ne.s32.totalorder %s148, %s150
      %p154 = scmp.eq.s32.totalorder %s20, 0
      %p155 = por %p153, %p154
      %p156 = scmp.ne.s32.totalorder %s148, %s150
      %p157 = scmp.eq.s32.totalorder %s25, 1
      %p158 = por %p156, %p157
      %p159 = scmp.ne.s32.totalorder %s150, %s151
      %p160 = scmp.eq.s32.totalorder %s25, 0
      %p161 = por %p159, %p160
      %p162 = scmp.ne.s32.totalorder %s150, %s151
      %p163 = scmp.eq.s32.totalorder %s26, 1
      %p164 = por %p162, %p163
      %p166 = scmp.ne.s32.totalorder %s151, %s165
      %p167 = scmp.eq.s32.totalorder %s26, 0
      %p168 = por %p166, %p167
      %s170 = sadd.s32 %s169, 1
      %p173 = scmp.eq.s32.totalorder %s20, 1
      %p174 = scmp.ne.s32.totalorder %s169, %s171
      %p175 = scmp.eq.s32.totalorder %s20, 0
      %p176 = por %p174, %p175
      %p177 = scmp.ne.s32.totalorder %s169, %s171
      %p178 = scmp.eq.s32.totalorder %s25, 1
      %p179 = por %p177, %p178
      %p180 = scmp.ne.s32.totalorder %s171, %s172
      %p181 = scmp.eq.s32.totalorder %s25, 0
      %p182 = por %p180, %p181
      %p183 = scmp.ne.s32.totalorder %s171, %s172
      %p184 = scmp.eq.s32.totalorder %s26, 1
      %p185 = por %p183, %p184
      %p187 = scmp.ne.s32.totalorder %s172, %s186
      %p188 = scmp.eq.s32.totalorder %s26, 0
      %p189 = por %p187, %p188
      %s191 = sadd.s32 %s190, 1
      %p194 = scmp.eq.s32.totalorder %s20, 1
      %p195 = scmp.ne.s32.totalorder %s190, %s192
      %p196 = scmp.eq.s32.totalorder %s20, 0
      %p197 = por %p195, %p196
      %p198 = scmp.ne.s32.totalorder %s190, %s192
      %p199 = scmp.eq.s32.totalorder %s25, 1
      %p200 = por %p198, %p199
      %p201 = scmp.ne.s32.totalorder %s192, %s193
      %p202 = scmp.eq.s32.totalorder %s25, 0
      %p203 = por %p201, %p202
      %p204 = scmp.ne.s32.totalorder %s192, %s193
      %p205 = scmp.eq.s32.totalorder %s26, 1
      %p206 = por %p204, %p205
      %p208 = scmp.ne.s32.totalorder %s193, %s207
      %p209 = scmp.eq.s32.totalorder %s26, 0
      %p210 = por %p208, %p209
      %s212 = sadd.s32 %s211, 1
      %p215 = scmp.eq.s32.totalorder %s20, 1
      %p216 = scmp.ne.s32.totalorder %s211, %s213
      %p217 = scmp.eq.s32.totalorder %s20, 0
      %p218 = por %p216, %p217
      %p219 = scmp.ne.s32.totalorder %s211, %s213
      %p220 = scmp.eq.s32.totalorder %s25, 1
      %p221 = por %p219, %p220
      %p222 = scmp.ne.s32.totalorder %s213, %s214
      %p223 = scmp.eq.s32.totalorder %s25, 0
      %p224 = por %p222, %p223
      %p225 = scmp.ne.s32.totalorder %s213, %s214
      %p226 = scmp.eq.s32.totalorder %s26, 1
      %p227 = por %p225, %p226
      %p229 = scmp.ne.s32.totalorder %s214, %s228
      %p230 = scmp.eq.s32.totalorder %s26, 0
      %p231 = por %p229, %p230
      %s233 = sadd.s32 %s232, 1
      %p236 = scmp.eq.s32.totalorder %s20, 1
      %p237 = scmp.ne.s32.totalorder %s232, %s234
      %p238 = scmp.eq.s32.totalorder %s20, 0
      %p239 = por %p237, %p238
      %p240 = scmp.ne.s32.totalorder %s232, %s234
      %p241 = scmp.eq.s32.totalorder %s25, 1
      %p242 = por %p240, %p241
      %p243 = scmp.ne.s32.totalorder %s234, %s235
      %p244 = scmp.eq.s32.totalorder %s25, 0
      %p245 = por %p243, %p244
      %p246 = scmp.ne.s32.totalorder %s234, %s235
      %p247 = scmp.eq.s32.totalorder %s26, 1
      %p248 = por %p246, %p247
      %p250 = scmp.ne.s32.totalorder %s235, %s249
      %p251 = scmp.eq.s32.totalorder %s26, 0
      %p252 = por %p250, %p251
      %s254 = sadd.s32 %s253, 1
      %p257 = scmp.eq.s32.totalorder %s20, 1
      %p258 = scmp.ne.s32.totalorder %s253, %s255
      %p259 = scmp.eq.s32.totalorder %s20, 0
      %p260 = por %p258, %p259
      %p261 = scmp.ne.s32.totalorder %s253, %s255
      %p262 = scmp.eq.s32.totalorder %s25, 1
      %p263 = por %p261, %p262
      %p264 = scmp.ne.s32.totalorder %s255, %s256
      %p265 = scmp.eq.s32.totalorder %s25, 0
      %p266 = por %p264, %p265
      %p267 = scmp.ne.s32.totalorder %s255, %s256
      %p268 = scmp.eq.s32.totalorder %s26, 1
      %p269 = por %p267, %p268
      %p271 = scmp.ne.s32.totalorder %s256, %s270
      %p272 = scmp.eq.s32.totalorder %s26, 0
      %p273 = por %p271, %p272
      %s275 = sadd.s32 %s274, 1
      %p278 = scmp.eq.s32.totalorder %s20, 1
      %p279 = scmp.ne.s32.totalorder %s274, %s276
      %p280 = scmp.eq.s32.totalorder %s20, 0
      %p281 = por %p279, %p280
      %p282 = scmp.ne.s32.totalorder %s274, %s276
      %p283 = scmp.eq.s32.totalorder %s25, 1
      %p284 = por %p282, %p283
      %p285 = scmp.ne.s32.totalorder %s276, %s277
      %p286 = scmp.eq.s32.totalorder %s25, 0
      %p287 = por %p285, %p286
      %p288 = scmp.ne.s32.totalorder %s276, %s277
      %p289 = scmp.eq.s32.totalorder %s26, 1
      %p290 = por %p288, %p289
      %p292 = scmp.ne.s32.totalorder %s277, %s291
      %p293 = scmp.eq.s32.totalorder %s26, 0
      %p294 = por %p292, %p293
      %s295 = ssub.s32 %s27, %s39
      %s296 = ssub.s32 %s28, %s35
      %s297 = sor.u32 %s295, %s296
      %p298 = scmp.eq.s32.totalorder %s297, 0
      %s300 = sadd.s32 %s299, 1
      %s301 = scalar_select %p298, %s299, %s300
      %p304 = pneg %p298
      %p305 = scmp.eq.s32.totalorder %s20, 1
      %p306 = por %p304, %p305
      %p307 = scmp.ne.s32.totalorder %s299, %s302
      %p308 = scmp.eq.s32.totalorder %s20, 0
      %p309 = por %p307, %p308
      %p310 = scmp.ne.s32.totalorder %s299, %s302
      %p311 = scmp.eq.s32.totalorder %s25, 1
      %p312 = por %p310, %p311
      %p313 = scmp.ne.s32.totalorder %s302, %s303
      %p314 = scmp.eq.s32.totalorder %s25, 0
      %p315 = por %p313, %p314
      %p316 = scmp.ne.s32.totalorder %s302, %s303
      %p317 = scmp.eq.s32.totalorder %s26, 1
      %p318 = por %p316, %p317
      %p320 = scmp.ne.s32.totalorder %s303, %s319
      %p321 = scmp.eq.s32.totalorder %s26, 0
      %p322 = por %p320, %p321
      %p323 = scmp.le.s32.totalorder 1, %s20
      %p324 = scmp.lt.s32.totalorder %s20, 3
      %p325 = pnand %p323, %p324
      %p326 = pneg %p325
      // Predicated region
      $region9: #{tpu_custom_call.1} parent=5 // pred_check
        _
      $region10: #{tpu_custom_call.1} parent=5 // pred_check_branch
        %328 = sbr.rel (%p325) target = $region12
      $region11: #{tpu_custom_call.1} parent=5 // pred_region
        %s329 = ssub.s32 %s20, 1
        // Predicated region
        $region13: #{tpu_custom_call.1} parent=11 // pred_check
          %p330 = pneg %p161
        $region14: #{tpu_custom_call.1} parent=11 // pred_check_branch
          %332 = sbr.rel (%p330) target = $region16
        $region15: #{tpu_custom_call.1} parent=11 // pred_region
          _
        $region16: #{tpu_custom_call.1} parent=11 // pred_fallthru
          _
        // Predicated region
        $region17: #{tpu_custom_call.1} parent=11 // pred_check
          %p333 = pneg %p182
        $region18: #{tpu_custom_call.1} parent=11 // pred_check_branch
          %335 = sbr.rel (%p333) target = $region20
        $region19: #{tpu_custom_call.1} parent=11 // pred_region
          _
        $region20: #{tpu_custom_call.1} parent=11 // pred_fallthru
          _
        // Predicated region
        $region21: #{tpu_custom_call.1} parent=11 // pred_check
          %p336 = pneg %p203
        $region22: #{tpu_custom_call.1} parent=11 // pred_check_branch
          %338 = sbr.rel (%p336) target = $region24
        $region23: #{tpu_custom_call.1} parent=11 // pred_region
          _
        $region24: #{tpu_custom_call.1} parent=11 // pred_fallthru
          _
        // Predicated region
        $region25: #{tpu_custom_call.1} parent=11 // pred_check
          %p339 = pneg %p224
        $region26: #{tpu_custom_call.1} parent=11 // pred_check_branch
          %341 = sbr.rel (%p339) target = $region28
        $region27: #{tpu_custom_call.1} parent=11 // pred_region
          _
        $region28: #{tpu_custom_call.1} parent=11 // pred_fallthru
          _
        // Predicated region
        $region29: #{tpu_custom_call.1} parent=11 // pred_check
          %p342 = pneg %p245
        $region30: #{tpu_custom_call.1} parent=11 // pred_check_branch
          %344 = sbr.rel (%p342) target = $region32
        $region31: #{tpu_custom_call.1} parent=11 // pred_region
          _
        $region32: #{tpu_custom_call.1} parent=11 // pred_fallthru
          _
        // Predicated region
        $region33: #{tpu_custom_call.1} parent=11 // pred_check
          %p345 = pneg %p266
        $region34: #{tpu_custom_call.1} parent=11 // pred_check_branch
          %347 = sbr.rel (%p345) target = $region36
        $region35: #{tpu_custom_call.1} parent=11 // pred_region
          _
        $region36: #{tpu_custom_call.1} parent=11 // pred_fallthru
          _
        // Predicated region
        $region37: #{tpu_custom_call.1} parent=11 // pred_check
          %p348 = pneg %p287
        $region38: #{tpu_custom_call.1} parent=11 // pred_check_branch
          %350 = sbr.rel (%p348) target = $region40
        $region39: #{tpu_custom_call.1} parent=11 // pred_region
          _
        $region40: #{tpu_custom_call.1} parent=11 // pred_fallthru
          _
      $region12: #{tpu_custom_call.1} parent=5 // pred_fallthru
        _
      %p351 = scmp.lt.s32.totalorder %s20, 2
      // Predicated region
      $region41: #{tpu_custom_call.1} parent=5 // pred_check
        %p352 = pneg %p351
      $region42: #{tpu_custom_call.1} parent=5 // pred_check_branch
        %354 = sbr.rel (%p352) target = $region44
      $region43: #{tpu_custom_call.1} parent=5 // pred_region
        // Predicated region
        $region45: #{tpu_custom_call.1} parent=43 // pred_check
          %p355 = pneg %p52
        $region46: #{tpu_custom_call.1} parent=43 // pred_check_branch
          %357 = sbr.rel (%p355) target = $region48
        $region47: #{tpu_custom_call.1} parent=43 // pred_region
          %p358 = scmp.lt.s32.totalorder %s27, 1
          %s359 = scalar_select %p358, %s27, 1
          %s360 = smul.addr %s359, 2
          %s361 = smul.addr %s360, 8
          %s362 = scalar_lea.vmem %s0, %s361
        $region48: #{tpu_custom_call.1} parent=43 // pred_fallthru
          _
        // Predicated region
        $region49: #{tpu_custom_call.1} parent=43 // pred_check
          %p363 = pneg %p80
        $region50: #{tpu_custom_call.1} parent=43 // pred_check_branch
          %365 = sbr.rel (%p363) target = $region52
        $region51: #{tpu_custom_call.1} parent=43 // pred_region
          %p366 = scmp.lt.s32.totalorder %s27, 1
          %s367 = scalar_select %p366, %s27, 1
          %p368 = scmp.lt.s32.totalorder %s28, 0
          %s369 = scalar_select %p368, %s28, 0
          %s370 = smul.addr %s367, 2
          %s371 = sadd.s32 %s369, %s370
          %s372 = smul.addr %s371, 8
          %s373 = scalar_lea.vmem %s1, %s372
        $region52: #{tpu_custom_call.1} parent=43 // pred_fallthru
          _
        // Predicated region
        $region53: #{tpu_custom_call.1} parent=43 // pred_check
          %p374 = pneg %p106
        $region54: #{tpu_custom_call.1} parent=43 // pred_check_branch
          %376 = sbr.rel (%p374) target = $region56
        $region55: #{tpu_custom_call.1} parent=43 // pred_region
          %p377 = scmp.lt.s32.totalorder %s27, 1
          %s378 = scalar_select %p377, %s27, 1
          %s379 = smul.addr %s378, 2
          %s380 = scalar_lea.vmem %s2, %s379
        $region56: #{tpu_custom_call.1} parent=43 // pred_fallthru
          _
        // Predicated region
        $region57: #{tpu_custom_call.1} parent=43 // pred_check
          %p381 = pneg %p134
        $region58: #{tpu_custom_call.1} parent=43 // pred_check_branch
          %383 = sbr.rel (%p381) target = $region60
        $region59: #{tpu_custom_call.1} parent=43 // pred_region
          %p384 = scmp.lt.s32.totalorder %s27, 1
          %s385 = scalar_select %p384, %s27, 1
          %p386 = scmp.lt.s32.totalorder %s28, 0
          %s387 = scalar_select %p386, %s28, 0
          %s388 = sadd.s32 %s387, %s385
          %s389 = scalar_lea.vmem %s3, %s388
        $region60: #{tpu_custom_call.1} parent=43 // pred_fallthru
          _
      $region44: #{tpu_custom_call.1} parent=5 // pred_fallthru
        _
      %p390 = scmp.le.s32.totalorder 1, %s20
      %p391 = scmp.lt.s32.totalorder %s20, 3
      %p392 = pnand %p390, %p391
      %p393 = pneg %p392
      // Predicated region
      $region61: #{tpu_custom_call.1} parent=5 // pred_check
        _
      $region62: #{tpu_custom_call.1} parent=5 // pred_check_branch
        %395 = sbr.rel (%p392) target = $region64
      $region63: #{tpu_custom_call.1} parent=5 // pred_region
        %s396 = ssub.s32 %s20, 1
        %p397 = scmp.lt.s32.totalorder %s29, 1
        %s398 = scalar_select %p397, %s29, 1
        %s399 = smul.addr %s398, 2
        %s400 = smul.addr %s399, 8
        %s401 = scalar_lea.vmem %s0, %s400
        %p402 = pneg %p58
        %p403 = pneg %p55
        %p404 = scmp.lt.s32.totalorder %s29, 1
        %s405 = scalar_select %p404, %s29, 1
        %p406 = scmp.lt.s32.totalorder %s30, 0
        %s407 = scalar_select %p406, %s30, 0
        %s408 = smul.addr %s405, 2
        %s409 = sadd.s32 %s407, %s408
        %s410 = smul.addr %s409, 8
        %s411 = scalar_lea.vmem %s1, %s410
        %p412 = pneg %p86
        %p413 = pneg %p83
        %p414 = scmp.lt.s32.totalorder %s29, 1
        %s415 = scalar_select %p414, %s29, 1
        %s416 = smul.addr %s415, 2
        %s417 = scalar_lea.vmem %s2, %s416
        %p418 = pneg %p112
        %p419 = pneg %p109
        %p420 = scmp.lt.s32.totalorder %s29, 1
        %s421 = scalar_select %p420, %s29, 1
        %p422 = scmp.lt.s32.totalorder %s30, 0
        %s423 = scalar_select %p422, %s30, 0
        %s424 = sadd.s32 %s423, %s421
        %s425 = scalar_lea.vmem %s3, %s424
        %p426 = pneg %p140
        %p427 = pneg %p137
        %p428 = pneg %p161
        %p429 = pneg %p158
        %p430 = pneg %p182
        %p431 = pneg %p179
        %p432 = pneg %p203
        %p433 = pneg %p200
        %p434 = pneg %p224
        %p435 = pneg %p221
        %p436 = pneg %p245
        %p437 = pneg %p242
        %p438 = pneg %p266
        %p439 = pneg %p263
        %p440 = pneg %p287
        %p441 = pneg %p284
        %p442 = pneg %p315
        %p443 = pneg %p312
        %s444 = sand.u32 %s302, 1
        %s445 = scalar_lea.sflag [#allocation3], %s444
        %s446 = sand.u32 %s302, 1
        %s447 = smul.addr %s446, 16
        %s448 = scalar_lea.vmem [#allocation2], %s447
        %p449 = scmp.lt.s32.totalorder %s29, 1
        %s450 = scalar_select %p449, %s29, 1
        %s451 = smul.addr %s450, 2
        %s452 = smul.addr %s451, 8
        %s453 = scalar_lea.vmem %s0, %s452
        %p454 = scmp.lt.s32.totalorder %s29, 1
        %s455 = scalar_select %p454, %s29, 1
        %p456 = scmp.lt.s32.totalorder %s30, 0
        %s457 = scalar_select %p456, %s30, 0
        %s458 = smul.addr %s455, 2
        %s459 = sadd.s32 %s457, %s458
        %s460 = smul.addr %s459, 8
        %s461 = scalar_lea.vmem %s1, %s460
        %p462 = scmp.lt.s32.totalorder %s29, 1
        %s463 = scalar_select %p462, %s29, 1
        %s464 = smul.addr %s463, 2
        %s465 = scalar_lea.vmem %s2, %s464
        %p466 = scmp.lt.s32.totalorder %s29, 1
        %s467 = scalar_select %p466, %s29, 1
        %p468 = scmp.lt.s32.totalorder %s30, 0
        %s469 = scalar_select %p468, %s30, 0
        %s470 = sadd.s32 %s469, %s467
        %s471 = scalar_lea.vmem %s3, %s470
        %v472 = vld [vmem:[%s453] sm:$0xff]
        %v473 = vld [vmem:[%s453 + $0x8] sm:$0xff]
        %v474 = vld [vmem:[%s461] sm:$0xff]
        %v475 = vld [vmem:[%s461 + $0x8] sm:$0xff]
        %v476 = vld [vmem:[%s465] sm:$0x3]
        %v477 = vld [vmem:[%s471] sm:$0x1]
        %v478 = vld [vmem:[%s4] sm:$0xff]
        %v479 = vld [vmem:[%s4 + $0x8] sm:$0xff]
        %v480 = vld [vmem:[%s5] sm:$0xff]
        %v481 = vld [vmem:[%s5 + $0x8] sm:$0xff]
        %483 = vset.pattern.permute.xlu0 0
        %484 = vperm.xlu0 %483, %v480
        %v485 = vpop.permute.xlu0 %484
        %488 = vset.pattern.permute.xlu0 0
        %489 = vperm.xlu0 %488, %v481
        %v490 = vpop.permute.xlu0 %489
        %vm492 = vcmask 130048
        %v494 = vsel %vm492, %v478, 0
        %v497 = vsel %vm492, %v479, 0
        %499 = vmatprep.subr.mxu0 0.0
        %500 = vmatpush1.msra.mxu0 0.0
        %501 = vmatprep.subr.mxu0 0.0
        %502 = vmatpush1.msra.mxu0 0.0
        %503 = vmatprep.subr.mxu0 0.0
        %504 = vmatpush1.msra.mxu0 0.0
        %505 = vmatprep.subr.mxu0 0.0
        %506 = vmatpush1.msra.mxu0 0.0
        %507 = vmatprep.subr.mxu0 0.0
        %508 = vmatpush1.msra.mxu0 0.0
        %509 = vmatprep.subr.mxu0 0.0
        %510 = vmatpush1.msra.mxu0 0.0
        %511 = vmatprep.subr.mxu0 0.0
        %512 = vmatpush1.msra.mxu0 0.0
        %513 = vmatprep.subr.mxu0 0.0
        %514 = vmatpush1.msra.mxu0 0.0
        %515 = vmatprep.subr.mxu0 0.0
        %516 = vmatpush1.msra.mxu0 0.0
        %517 = vmatprep.subr.mxu0 0.0
        %518 = vmatpush1.msra.mxu0 0.0
        %519 = vmatprep.subr.mxu0 0.0
        %520 = vmatpush1.msra.mxu0 0.0
        %521 = vmatprep.subr.mxu0 0.0
        %522 = vmatpush1.msra.mxu0 0.0
        %523 = vmatprep.subr.mxu0 0.0
        %524 = vmatpush1.msra.mxu0 0.0
        %525 = vmatprep.subr.mxu0 0.0
        %526 = vmatpush1.msra.mxu0 0.0
        %527 = vmatprep.subr.mxu0 0.0
        %528 = vmatpush1.msra.mxu0 %v475
        %529 = vmatprep.subr.mxu0 0.0
        %530 = vmatpush1.msra.mxu0 %v474
        %531 = vmatprep.subr.mxu0 0.0
        %532 = vmatpush2.msra.mxu0 0.0
        %533 = vmatprep.subr.mxu0 0.0
        %534 = vmatpush2.msra.mxu0 0.0
        %535 = vmatprep.subr.mxu0 0.0
        %536 = vmatpush2.msra.mxu0 0.0
        %537 = vmatprep.subr.mxu0 0.0
        %538 = vmatpush2.msra.mxu0 0.0
        %539 = vmatprep.subr.mxu0 0.0
        %540 = vmatpush2.msra.mxu0 0.0
        %541 = vmatprep.subr.mxu0 0.0
        %542 = vmatpush2.msra.mxu0 0.0
        %543 = vmatprep.subr.mxu0 0.0
        %544 = vmatpush2.msra.mxu0 0.0
        %545 = vmatprep.subr.mxu0 0.0
        %546 = vmatpush2.msra.mxu0 0.0
        %547 = vmatprep.subr.mxu0 0.0
        %548 = vmatpush2.msra.mxu0 0.0
        %549 = vmatprep.subr.mxu0 0.0
        %550 = vmatpush2.msra.mxu0 0.0
        %551 = vmatprep.subr.mxu0 0.0
        %552 = vmatpush2.msra.mxu0 0.0
        %553 = vmatprep.subr.mxu0 0.0
        %554 = vmatpush2.msra.mxu0 0.0
        %555 = vmatprep.subr.mxu0 0.0
        %556 = vmatpush2.msra.mxu0 0.0
        %557 = vmatprep.subr.mxu0 0.0
        %558 = vmatpush2.msra.mxu0 0.0
        %559 = vmatprep.subr.mxu0 0.0
        %560 = vmatpush2.msra.mxu0 0.0
        %561 = vmatprep.subr.mxu0 0.0
        %562 = vmatpush2.msra.mxu0 0.0
        %563 = vmatprep.mubr.f32.mxu0 0.0
        %564 = vmatmul.mubr.f32.gmra.mxu0 %v494
        %v565 = vpop.f32.mrf.mxu0
        %v566 = vadd.f32 %v485, %v565
        %v567 = vpop.f32.mrf.mxu0
        %568 = vmatprep.mubr.f32.mxu0 0.0
        %569 = vmatmul.mubr.f32.gmra.mxu0 %v497
        %v570 = vpop.f32.mrf.mxu0
        %v571 = vadd.f32 %v490, %v570
        %v572 = vpop.f32.mrf.mxu0
        %573 = vdwg.mxu0
        %v574 = vld [vmem:[%s6] sm:$0xff]
        %v575 = vld [vmem:[%s6 + $0x8] sm:$0xff]
        %v576 = vld [vmem:[%s6 + $0x10] sm:$0xff]
        %v577 = vld [vmem:[%s6 + $0x18] sm:$0xff]
        %v578 = vld [vmem:[%s7] sm:$0xff]
        %v579 = vld [vmem:[%s7 + $0x8] sm:$0xff]
        %v580 = vld [vmem:[%s7 + $0x10] sm:$0xff]
        %v581 = vld [vmem:[%s7 + $0x18] sm:$0xff]
        %583 = vset.pattern.permute.xlu0 0
        %584 = vperm.xlu0 %583, %v578
        %v585 = vpop.permute.xlu0 %584
        %588 = vset.pattern.permute.xlu0 0
        %589 = vperm.xlu0 %588, %v579
        %v590 = vpop.permute.xlu0 %589
        %593 = vset.pattern.permute.xlu0 0
        %594 = vperm.xlu0 %593, %v580
        %v595 = vpop.permute.xlu0 %594
        %598 = vset.pattern.permute.xlu0 0
        %599 = vperm.xlu0 %598, %v581
        %v600 = vpop.permute.xlu0 %599
        %v603 = vsel %vm492, %v574, 0
        %v606 = vsel %vm492, %v575, 0
        %v609 = vsel %vm492, %v576, 0
        %v612 = vsel %vm492, %v577, 0
        %614 = vmatprep.subr.mxu0 0.0
        %615 = vmatpush1.msra.mxu0 0.0
        %616 = vmatprep.subr.mxu0 0.0
        %617 = vmatpush1.msra.mxu0 0.0
        %618 = vmatprep.subr.mxu0 0.0
        %619 = vmatpush1.msra.mxu0 0.0
        %620 = vmatprep.subr.mxu0 0.0
        %621 = vmatpush1.msra.mxu0 0.0
        %622 = vmatprep.subr.mxu0 0.0
        %623 = vmatpush1.msra.mxu0 0.0
        %624 = vmatprep.subr.mxu0 0.0
        %625 = vmatpush1.msra.mxu0 0.0
        %626 = vmatprep.subr.mxu0 0.0
        %627 = vmatpush1.msra.mxu0 0.0
        %628 = vmatprep.subr.mxu0 0.0
        %629 = vmatpush1.msra.mxu0 0.0
        %630 = vmatprep.subr.mxu0 0.0
        %631 = vmatpush1.msra.mxu0 0.0
        %632 = vmatprep.subr.mxu0 0.0
        %633 = vmatpush1.msra.mxu0 0.0
        %634 = vmatprep.subr.mxu0 0.0
        %635 = vmatpush1.msra.mxu0 0.0
        %636 = vmatprep.subr.mxu0 0.0
        %637 = vmatpush1.msra.mxu0 0.0
        %638 = vmatprep.subr.mxu0 0.0
        %639 = vmatpush1.msra.mxu0 0.0
        %640 = vmatprep.subr.mxu0 0.0
        %641 = vmatpush1.msra.mxu0 0.0
        %642 = vmatprep.subr.mxu0 0.0
        %643 = vmatpush1.msra.mxu0 %v473
        %644 = vmatprep.subr.mxu0 0.0
        %645 = vmatpush1.msra.mxu0 %v472
        %646 = vmatprep.subr.mxu0 0.0
        %647 = vmatpush2.msra.mxu0 0.0
        %648 = vmatprep.subr.mxu0 0.0
        %649 = vmatpush2.msra.mxu0 0.0
        %650 = vmatprep.subr.mxu0 0.0
        %651 = vmatpush2.msra.mxu0 0.0
        %652 = vmatprep.subr.mxu0 0.0
        %653 = vmatpush2.msra.mxu0 0.0
        %654 = vmatprep.subr.mxu0 0.0
        %655 = vmatpush2.msra.mxu0 0.0
        %656 = vmatprep.subr.mxu0 0.0
        %657 = vmatpush2.msra.mxu0 0.0
        %658 = vmatprep.subr.mxu0 0.0
        %659 = vmatpush2.msra.mxu0 0.0
        %660 = vmatprep.subr.mxu0 0.0
        %661 = vmatpush2.msra.mxu0 0.0
        %662 = vmatprep.subr.mxu0 0.0
        %663 = vmatpush2.msra.mxu0 0.0
        %664 = vmatprep.subr.mxu0 0.0
        %665 = vmatpush2.msra.mxu0 0.0
        %666 = vmatprep.subr.mxu0 0.0
        %667 = vmatpush2.msra.mxu0 0.0
        %668 = vmatprep.subr.mxu0 0.0
        %669 = vmatpush2.msra.mxu0 0.0
        %670 = vmatprep.subr.mxu0 0.0
        %671 = vmatpush2.msra.mxu0 0.0
        %672 = vmatprep.subr.mxu0 0.0
        %673 = vmatpush2.msra.mxu0 0.0
        %674 = vmatprep.subr.mxu0 0.0
        %675 = vmatpush2.msra.mxu0 0.0
        %676 = vmatprep.subr.mxu0 0.0
        %677 = vmatpush2.msra.mxu0 0.0
        %678 = vmatprep.mubr.f32.mxu0 0.0
        %679 = vmatmul.mubr.f32.gmra.mxu0 %v603
        %v680 = vpop.f32.mrf.mxu0
        %v681 = vadd.f32 %v585, %v680
        %v682 = vpop.f32.mrf.mxu0
        %683 = vmatprep.mubr.f32.mxu0 0.0
        %684 = vmatmul.mubr.f32.gmra.mxu0 %v606
        %v685 = vpop.f32.mrf.mxu0
        %v686 = vadd.f32 %v590, %v685
        %v687 = vpop.f32.mrf.mxu0
        %688 = vmatprep.mubr.f32.mxu0 0.0
        %689 = vmatmul.mubr.f32.gmra.mxu0 %v609
        %v690 = vpop.f32.mrf.mxu0
        %v691 = vadd.f32 %v595, %v690
        %v692 = vpop.f32.mrf.mxu0
        %693 = vmatprep.mubr.f32.mxu0 0.0
        %694 = vmatmul.mubr.f32.gmra.mxu0 %v612
        %v695 = vpop.f32.mrf.mxu0
        %v696 = vadd.f32 %v600, %v695
        %v697 = vpop.f32.mrf.mxu0
        %698 = vdwg.mxu0
        %v700 = vrot.slane %v476, 1
        %701 = vxpose.xlu0.b32.start [1/16] %v566, 128
        %702 = vxpose.xlu0.b32.cont [2/16] 1.0, 128
        %703 = vxpose.xlu0.b32.cont [3/16] 0.0, 128
        %704 = vxpose.xlu0.b32.cont [4/16] 0.0, 128
        %705 = vxpose.xlu0.b32.cont [5/16] 0.0, 128
        %706 = vxpose.xlu0.b32.cont [6/16] 0.0, 128
        %707 = vxpose.xlu0.b32.cont [7/16] 0.0, 128
        %708 = vxpose.xlu0.b32.cont [8/16] 0.0, 128
        %709 = vxpose.xlu0.b32.cont [9/16] 0.0, 128
        %710 = vxpose.xlu0.b32.cont [10/16] 0.0, 128
        %711 = vxpose.xlu0.b32.cont [11/16] 0.0, 128
        %712 = vxpose.xlu0.b32.cont [12/16] 0.0, 128
        %713 = vxpose.xlu0.b32.cont [13/16] 0.0, 128
        %714 = vxpose.xlu0.b32.cont [14/16] 0.0, 128
        %715 = vxpose.xlu0.b32.cont [15/16] 0.0, 128
        %716 = vxpose.xlu0.b32.end [16/16] 0.0, 128
        %v717 = vpop.trf.xlu0
        %v718 = vpop.trf.xlu0
        %v719 = vpop.trf.xlu0
        %v720 = vpop.trf.xlu0
        %v721 = vpop.trf.xlu0
        %v722 = vpop.trf.xlu0
        %v723 = vpop.trf.xlu0
        %v724 = vpop.trf.xlu0
        %v725 = vpop.trf.xlu0
        %v726 = vpop.trf.xlu0
        %v727 = vpop.trf.xlu0
        %v728 = vpop.trf.xlu0
        %v729 = vpop.trf.xlu0
        %v730 = vpop.trf.xlu0
        %v731 = vpop.trf.xlu0
        %v732 = vpop.trf.xlu0
        %vm733 = vcmask 72704
        %v735 = vsel %vm733, %v717, 0
        %v738 = vsel %vm733, %v718, 0
        %v741 = vsel %vm733, %v719, 0
        %v744 = vsel %vm733, %v720, 0
        %v747 = vsel %vm733, %v721, 0
        %v750 = vsel %vm733, %v722, 0
        %v753 = vsel %vm733, %v723, 0
        %v756 = vsel %vm733, %v724, 0
        %v759 = vsel %vm733, %v725, 0
        %v762 = vsel %vm733, %v726, 0
        %v765 = vsel %vm733, %v727, 0
        %v768 = vsel %vm733, %v728, 0
        %v771 = vsel %vm733, %v729, 0
        %v774 = vsel %vm733, %v730, 0
        %v777 = vsel %vm733, %v731, 0
        %v780 = vsel %vm733, %v732, 0
        %vm782 = vcmask 1040384
        %v783 = vsel %vm782, %v700, 0
        %785 = vmatprep.subr.mxu0 0.0
        %786 = vmatpush1.msra.mxu0 0.0
        %787 = vmatprep.subr.mxu0 0.0
        %788 = vmatpush1.msra.mxu0 0.0
        %789 = vmatprep.subr.mxu0 0.0
        %790 = vmatpush1.msra.mxu0 0.0
        %791 = vmatprep.subr.mxu0 0.0
        %792 = vmatpush1.msra.mxu0 0.0
        %793 = vmatprep.subr.mxu0 0.0
        %794 = vmatpush1.msra.mxu0 0.0
        %795 = vmatprep.subr.mxu0 0.0
        %796 = vmatpush1.msra.mxu0 0.0
        %797 = vmatprep.subr.mxu0 0.0
        %798 = vmatpush1.msra.mxu0 0.0
        %799 = vmatprep.subr.mxu0 0.0
        %800 = vmatpush1.msra.mxu0 0.0
        %801 = vmatprep.subr.mxu0 0.0
        %802 = vmatpush1.msra.mxu0 0.0
        %803 = vmatprep.subr.mxu0 0.0
        %804 = vmatpush1.msra.mxu0 0.0
        %805 = vmatprep.subr.mxu0 0.0
        %806 = vmatpush1.msra.mxu0 0.0
        %807 = vmatprep.subr.mxu0 0.0
        %808 = vmatpush1.msra.mxu0 0.0
        %809 = vmatprep.subr.mxu0 0.0
        %810 = vmatpush1.msra.mxu0 0.0
        %811 = vmatprep.subr.mxu0 0.0
        %812 = vmatpush1.msra.mxu0 0.0
        %813 = vmatprep.subr.mxu0 0.0
        %814 = vmatpush1.msra.mxu0 %v783
        %815 = vmatprep.subr.mxu0 0.0
        %816 = vmatpush1.msra.mxu0 %v681
        %817 = vmatprep.subr.mxu0 0.0
        %818 = vmatpush2.msra.mxu0 0.0
        %819 = vmatprep.subr.mxu0 0.0
        %820 = vmatpush2.msra.mxu0 0.0
        %821 = vmatprep.subr.mxu0 0.0
        %822 = vmatpush2.msra.mxu0 0.0
        %823 = vmatprep.subr.mxu0 0.0
        %824 = vmatpush2.msra.mxu0 0.0
        %825 = vmatprep.subr.mxu0 0.0
        %826 = vmatpush2.msra.mxu0 0.0
        %827 = vmatprep.subr.mxu0 0.0
        %828 = vmatpush2.msra.mxu0 0.0
        %829 = vmatprep.subr.mxu0 0.0
        %830 = vmatpush2.msra.mxu0 0.0
        %831 = vmatprep.subr.mxu0 0.0
        %832 = vmatpush2.msra.mxu0 0.0
        %833 = vmatprep.subr.mxu0 0.0
        %834 = vmatpush2.msra.mxu0 0.0
        %835 = vmatprep.subr.mxu0 0.0
        %836 = vmatpush2.msra.mxu0 0.0
        %837 = vmatprep.subr.mxu0 0.0
        %838 = vmatpush2.msra.mxu0 0.0
        %839 = vmatprep.subr.mxu0 0.0
        %840 = vmatpush2.msra.mxu0 0.0
        %841 = vmatprep.subr.mxu0 0.0
        %842 = vmatpush2.msra.mxu0 0.0
        %843 = vmatprep.subr.mxu0 0.0
        %844 = vmatpush2.msra.mxu0 0.0
        %845 = vmatprep.subr.mxu0 0.0
        %846 = vmatpush2.msra.mxu0 0.0
        %847 = vmatprep.subr.mxu0 0.0
        %848 = vmatpush2.msra.mxu0 0.0
        %849 = vmatprep.mubr.f32.mxu0 0.0
        %850 = vmatmul.mubr.f32.gmra.mxu0 %v735
        %v851 = vpop.f32.mrf.mxu0
        %v852 = vadd.f32 0.0, %v851
        %v853 = vpop.f32.mrf.mxu0
        %854 = vmatprep.mubr.f32.mxu0 0.0
        %855 = vmatmul.mubr.f32.gmra.mxu0 %v738
        %v856 = vpop.f32.mrf.mxu0
        %v857 = vadd.f32 0.0, %v856
        %v858 = vpop.f32.mrf.mxu0
        %859 = vmatprep.mubr.f32.mxu0 0.0
        %860 = vmatmul.mubr.f32.gmra.mxu0 %v741
        %v861 = vpop.f32.mrf.mxu0
        %v862 = vadd.f32 0.0, %v861
        %v863 = vpop.f32.mrf.mxu0
        %864 = vmatprep.mubr.f32.mxu0 0.0
        %865 = vmatmul.mubr.f32.gmra.mxu0 %v744
        %v866 = vpop.f32.mrf.mxu0
        %v867 = vadd.f32 0.0, %v866
        %v868 = vpop.f32.mrf.mxu0
        %869 = vmatprep.mubr.f32.mxu0 0.0
        %870 = vmatmul.mubr.f32.gmra.mxu0 %v747
        %v871 = vpop.f32.mrf.mxu0
        %v872 = vadd.f32 0.0, %v871
        %v873 = vpop.f32.mrf.mxu0
        %874 = vmatprep.mubr.f32.mxu0 0.0
        %875 = vmatmul.mubr.f32.gmra.mxu0 %v750
        %v876 = vpop.f32.mrf.mxu0
        %v877 = vadd.f32 0.0, %v876
        %v878 = vpop.f32.mrf.mxu0
        %879 = vmatprep.mubr.f32.mxu0 0.0
        %880 = vmatmul.mubr.f32.gmra.mxu0 %v753
        %v881 = vpop.f32.mrf.mxu0
        %v882 = vadd.f32 0.0, %v881
        %v883 = vpop.f32.mrf.mxu0
        %884 = vmatprep.mubr.f32.mxu0 0.0
        %885 = vmatmul.mubr.f32.gmra.mxu0 %v756
        %v886 = vpop.f32.mrf.mxu0
        %v887 = vadd.f32 0.0, %v886
        %v888 = vpop.f32.mrf.mxu0
        %889 = vmatprep.mubr.f32.mxu0 0.0
        %890 = vmatmul.mubr.f32.gmra.mxu0 %v759
        %v891 = vpop.f32.mrf.mxu0
        %v892 = vadd.f32 0.0, %v891
        %v893 = vpop.f32.mrf.mxu0
        %894 = vmatprep.mubr.f32.mxu0 0.0
        %895 = vmatmul.mubr.f32.gmra.mxu0 %v762
        %v896 = vpop.f32.mrf.mxu0
        %v897 = vadd.f32 0.0, %v896
        %v898 = vpop.f32.mrf.mxu0
        %899 = vmatprep.mubr.f32.mxu0 0.0
        %900 = vmatmul.mubr.f32.gmra.mxu0 %v765
        %v901 = vpop.f32.mrf.mxu0
        %v902 = vadd.f32 0.0, %v901
        %v903 = vpop.f32.mrf.mxu0
        %904 = vmatprep.mubr.f32.mxu0 0.0
        %905 = vmatmul.mubr.f32.gmra.mxu0 %v768
        %v906 = vpop.f32.mrf.mxu0
        %v907 = vadd.f32 0.0, %v906
        %v908 = vpop.f32.mrf.mxu0
        %909 = vmatprep.mubr.f32.mxu0 0.0
        %910 = vmatmul.mubr.f32.gmra.mxu0 %v771
        %v911 = vpop.f32.mrf.mxu0
        %v912 = vadd.f32 0.0, %v911
        %v913 = vpop.f32.mrf.mxu0
        %914 = vmatprep.mubr.f32.mxu0 0.0
        %915 = vmatmul.mubr.f32.gmra.mxu0 %v774
        %v916 = vpop.f32.mrf.mxu0
        %v917 = vadd.f32 0.0, %v916
        %v918 = vpop.f32.mrf.mxu0
        %919 = vmatprep.mubr.f32.mxu0 0.0
        %920 = vmatmul.mubr.f32.gmra.mxu0 %v777
        %v921 = vpop.f32.mrf.mxu0
        %v922 = vadd.f32 0.0, %v921
        %v923 = vpop.f32.mrf.mxu0
        %924 = vmatprep.mubr.f32.mxu0 0.0
        %925 = vmatmul.mubr.f32.gmra.mxu0 %v780
        %v926 = vpop.f32.mrf.mxu0
        %v927 = vadd.f32 0.0, %v926
        %v928 = vpop.f32.mrf.mxu0
        %929 = vdwg.mxu0
        %930 = vmax.xlane.f32.xlu0 %v852
        %v931 = vpop.xlane.xlu0 %930
        %932 = vmax.xlane.f32.xlu0 %v857
        %v933 = vpop.xlane.xlu0 %932
        %934 = vmax.xlane.f32.xlu0 %v862
        %v935 = vpop.xlane.xlu0 %934
        %936 = vmax.xlane.f32.xlu0 %v867
        %v937 = vpop.xlane.xlu0 %936
        %938 = vmax.xlane.f32.xlu0 %v872
        %v939 = vpop.xlane.xlu0 %938
        %940 = vmax.xlane.f32.xlu0 %v877
        %v941 = vpop.xlane.xlu0 %940
        %942 = vmax.xlane.f32.xlu0 %v882
        %v943 = vpop.xlane.xlu0 %942
        %944 = vmax.xlane.f32.xlu0 %v887
        %v945 = vpop.xlane.xlu0 %944
        %946 = vmax.xlane.f32.xlu0 %v892
        %v947 = vpop.xlane.xlu0 %946
        %948 = vmax.xlane.f32.xlu0 %v897
        %v949 = vpop.xlane.xlu0 %948
        %950 = vmax.xlane.f32.xlu0 %v902
        %v951 = vpop.xlane.xlu0 %950
        %952 = vmax.xlane.f32.xlu0 %v907
        %v953 = vpop.xlane.xlu0 %952
        %954 = vmax.xlane.f32.xlu0 %v912
        %v955 = vpop.xlane.xlu0 %954
        %956 = vmax.xlane.f32.xlu0 %v917
        %v957 = vpop.xlane.xlu0 %956
        %958 = vmax.xlane.f32.xlu0 %v922
        %v959 = vpop.xlane.xlu0 %958
        %960 = vmax.xlane.f32.xlu0 %v927
        %v961 = vpop.xlane.xlu0 %960
        %v962 = vsub.f32 %v852, %v931
        %v963 = vsub.f32 %v857, %v933
        %v964 = vsub.f32 %v862, %v935
        %v965 = vsub.f32 %v867, %v937
        %v966 = vsub.f32 %v872, %v939
        %v967 = vsub.f32 %v877, %v941
        %v968 = vsub.f32 %v882, %v943
        %v969 = vsub.f32 %v887, %v945
        %v970 = vsub.f32 %v892, %v947
        %v971 = vsub.f32 %v897, %v949
        %v972 = vsub.f32 %v902, %v951
        %v973 = vsub.f32 %v907, %v953
        %v974 = vsub.f32 %v912, %v955
        %v975 = vsub.f32 %v917, %v957
        %v976 = vsub.f32 %v922, %v959
        %v977 = vsub.f32 %v927, %v961
        %v978 = vmul.f32 %v962, 1.442695
        %v979 = vpow.pop %v978
        %v980 = vmul.f32 %v963, 1.442695
        %v981 = vpow.pop %v980
        %v982 = vmul.f32 %v964, 1.442695
        %v983 = vpow.pop %v982
        %v984 = vmul.f32 %v965, 1.442695
        %v985 = vpow.pop %v984
        %v986 = vmul.f32 %v966, 1.442695
        %v987 = vpow.pop %v986
        %v988 = vmul.f32 %v967, 1.442695
        %v989 = vpow.pop %v988
        %v990 = vmul.f32 %v968, 1.442695
        %v991 = vpow.pop %v990
        %v992 = vmul.f32 %v969, 1.442695
        %v993 = vpow.pop %v992
        %v994 = vmul.f32 %v970, 1.442695
        %v995 = vpow.pop %v994
        %v996 = vmul.f32 %v971, 1.442695
        %v997 = vpow.pop %v996
        %v998 = vmul.f32 %v972, 1.442695
        %v999 = vpow.pop %v998
        %v1000 = vmul.f32 %v973, 1.442695
        %v1001 = vpow.pop %v1000
        %v1002 = vmul.f32 %v974, 1.442695
        %v1003 = vpow.pop %v1002
        %v1004 = vmul.f32 %v975, 1.442695
        %v1005 = vpow.pop %v1004
        %v1006 = vmul.f32 %v976, 1.442695
        %v1007 = vpow.pop %v1006
        %v1008 = vmul.f32 %v977, 1.442695
        %v1009 = vpow.pop %v1008
        %v1010 = vlaneseq
        %v1011 = vshrl.u32 %v1010, 7
        %v1012 = vsub.s32 0, %v1011
        %v1013 = vrot.slane %v476, %v1012
        %v1014 = vmul.f32 %v691, %v1013
        %1015 = vmatprep.subr.mxu0 0.0
        %1016 = vmatpush1.xpose.msra.mxu0 %v1009
        %1017 = vmatprep.subr.mxu0 0.0
        %1018 = vmatpush1.xpose.msra.mxu0 %v1007
        %1019 = vmatprep.subr.mxu0 0.0
        %1020 = vmatpush1.xpose.msra.mxu0 %v1005
        %1021 = vmatprep.subr.mxu0 0.0
        %1022 = vmatpush1.xpose.msra.mxu0 %v1003
        %1023 = vmatprep.subr.mxu0 0.0
        %1024 = vmatpush1.xpose.msra.mxu0 %v1001
        %1025 = vmatprep.subr.mxu0 0.0
        %1026 = vmatpush1.xpose.msra.mxu0 %v999
        %1027 = vmatprep.subr.mxu0 0.0
        %1028 = vmatpush1.xpose.msra.mxu0 %v997
        %1029 = vmatprep.subr.mxu0 0.0
        %1030 = vmatpush1.xpose.msra.mxu0 %v995
        %1031 = vmatprep.subr.mxu0 0.0
        %1032 = vmatpush1.xpose.msra.mxu0 %v993
        %1033 = vmatprep.subr.mxu0 0.0
        %1034 = vmatpush1.xpose.msra.mxu0 %v991
        %1035 = vmatprep.subr.mxu0 0.0
        %1036 = vmatpush1.xpose.msra.mxu0 %v989
        %1037 = vmatprep.subr.mxu0 0.0
        %1038 = vmatpush1.xpose.msra.mxu0 %v987
        %1039 = vmatprep.subr.mxu0 0.0
        %1040 = vmatpush1.xpose.msra.mxu0 %v985
        %1041 = vmatprep.subr.mxu0 0.0
        %1042 = vmatpush1.xpose.msra.mxu0 %v983
        %1043 = vmatprep.subr.mxu0 0.0
        %1044 = vmatpush1.xpose.msra.mxu0 %v981
        %1045 = vmatprep.subr.mxu0 0.0
        %1046 = vmatpush1.xpose.msra.mxu0 %v979
        %1047 = vmatprep.subr.mxu0 0.0
        %1048 = vmatpush2.xpose.msra.mxu0 0.0
        %1049 = vmatprep.subr.mxu0 0.0
        %1050 = vmatpush2.xpose.msra.mxu0 0.0
        %1051 = vmatprep.subr.mxu0 0.0
        %1052 = vmatpush2.xpose.msra.mxu0 0.0
        %1053 = vmatprep.subr.mxu0 0.0
        %1054 = vmatpush2.xpose.msra.mxu0 0.0
        %1055 = vmatprep.subr.mxu0 0.0
        %1056 = vmatpush2.xpose.msra.mxu0 0.0
        %1057 = vmatprep.subr.mxu0 0.0
        %1058 = vmatpush2.xpose.msra.mxu0 0.0
        %1059 = vmatprep.subr.mxu0 0.0
        %1060 = vmatpush2.xpose.msra.mxu0 0.0
        %1061 = vmatprep.subr.mxu0 0.0
        %1062 = vmatpush2.xpose.msra.mxu0 0.0
        %1063 = vmatprep.subr.mxu0 0.0
        %1064 = vmatpush2.xpose.msra.mxu0 0.0
        %1065 = vmatprep.subr.mxu0 0.0
        %1066 = vmatpush2.xpose.msra.mxu0 0.0
        %1067 = vmatprep.subr.mxu0 0.0
        %1068 = vmatpush2.xpose.msra.mxu0 0.0
        %1069 = vmatprep.subr.mxu0 0.0
        %1070 = vmatpush2.xpose.msra.mxu0 0.0
        %1071 = vmatprep.subr.mxu0 0.0
        %1072 = vmatpush2.xpose.msra.mxu0 0.0
        %1073 = vmatprep.subr.mxu0 0.0
        %1074 = vmatpush2.xpose.msra.mxu0 0.0
        %1075 = vmatprep.subr.mxu0 0.0
        %1076 = vmatpush2.xpose.msra.mxu0 0.0
        %1077 = vmatprep.subr.mxu0 0.0
        %1078 = vmatpush2.xpose.msra.mxu0 0.0
        %1079 = vmatprep.mubr.f32.mxu0 0.0
        %1080 = vmatmul.mubr.f32.gmra.mxu0 %v1014
        %v1081 = vpop.f32.mrf.mxu0
        %v1082 = vadd.f32 0.0, %v1081
        %v1083 = vpop.f32.mrf.mxu0
        %1084 = vmatprep.mubr.f32.mxu0 0.0
        %1085 = vmatmul.mubr.f32.gmra.mxu0 1.0
        %v1086 = vpop.f32.mrf.mxu0
        %v1087 = vadd.f32 0.0, %v1086
        %v1088 = vpop.f32.mrf.mxu0
        %1089 = vdwg.mxu0
        %v1090 = vrcp.pop %v1087
        %v1091 = vlaneseq
        %v1092 = vshrl.u32 %v1091, 7
        %v1093 = vsub.s32 0, %v1092
        %v1094 = vrot.slane %v1090, %v1093
        %v1095 = vmul.f32 %v1082, %v1094
        %v1096 = vmax.f32 %v1095, 0.0
        %1097 = vxpose.xlu0.b32.start [1/16] %v571, 128
        %1098 = vxpose.xlu0.b32.cont [2/16] 1.0, 128
        %1099 = vxpose.xlu0.b32.cont [3/16] 0.0, 128
        %1100 = vxpose.xlu0.b32.cont [4/16] 0.0, 128
        %1101 = vxpose.xlu0.b32.cont [5/16] 0.0, 128
        %1102 = vxpose.xlu0.b32.cont [6/16] 0.0, 128
        %1103 = vxpose.xlu0.b32.cont [7/16] 0.0, 128
        %1104 = vxpose.xlu0.b32.cont [8/16] 0.0, 128
        %1105 = vxpose.xlu0.b32.cont [9/16] 0.0, 128
        %1106 = vxpose.xlu0.b32.cont [10/16] 0.0, 128
        %1107 = vxpose.xlu0.b32.cont [11/16] 0.0, 128
        %1108 = vxpose.xlu0.b32.cont [12/16] 0.0, 128
        %1109 = vxpose.xlu0.b32.cont [13/16] 0.0, 128
        %1110 = vxpose.xlu0.b32.cont [14/16] 0.0, 128
        %1111 = vxpose.xlu0.b32.cont [15/16] 0.0, 128
        %1112 = vxpose.xlu0.b32.end [16/16] 0.0, 128
        %v1113 = vpop.trf.xlu0
        %v1114 = vpop.trf.xlu0
        %v1115 = vpop.trf.xlu0
        %v1116 = vpop.trf.xlu0
        %v1117 = vpop.trf.xlu0
        %v1118 = vpop.trf.xlu0
        %v1119 = vpop.trf.xlu0
        %v1120 = vpop.trf.xlu0
        %v1121 = vpop.trf.xlu0
        %v1122 = vpop.trf.xlu0
        %v1123 = vpop.trf.xlu0
        %v1124 = vpop.trf.xlu0
        %v1125 = vpop.trf.xlu0
        %v1126 = vpop.trf.xlu0
        %v1127 = vpop.trf.xlu0
        %v1128 = vpop.trf.xlu0
        %v1130 = vsel %vm733, %v1113, 0
        %v1133 = vsel %vm733, %v1114, 0
        %v1136 = vsel %vm733, %v1115, 0
        %v1139 = vsel %vm733, %v1116, 0
        %v1142 = vsel %vm733, %v1117, 0
        %v1145 = vsel %vm733, %v1118, 0
        %v1148 = vsel %vm733, %v1119, 0
        %v1151 = vsel %vm733, %v1120, 0
        %v1154 = vsel %vm733, %v1121, 0
        %v1157 = vsel %vm733, %v1122, 0
        %v1160 = vsel %vm733, %v1123, 0
        %v1163 = vsel %vm733, %v1124, 0
        %v1166 = vsel %vm733, %v1125, 0
        %v1169 = vsel %vm733, %v1126, 0
        %v1172 = vsel %vm733, %v1127, 0
        %v1175 = vsel %vm733, %v1128, 0
        %1177 = vmatprep.subr.mxu0 0.0
        %1178 = vmatpush1.msra.mxu0 0.0
        %1179 = vmatprep.subr.mxu0 0.0
        %1180 = vmatpush1.msra.mxu0 0.0
        %1181 = vmatprep.subr.mxu0 0.0
        %1182 = vmatpush1.msra.mxu0 0.0
        %1183 = vmatprep.subr.mxu0 0.0
        %1184 = vmatpush1.msra.mxu0 0.0
        %1185 = vmatprep.subr.mxu0 0.0
        %1186 = vmatpush1.msra.mxu0 0.0
        %1187 = vmatprep.subr.mxu0 0.0
        %1188 = vmatpush1.msra.mxu0 0.0
        %1189 = vmatprep.subr.mxu0 0.0
        %1190 = vmatpush1.msra.mxu0 0.0
        %1191 = vmatprep.subr.mxu0 0.0
        %1192 = vmatpush1.msra.mxu0 0.0
        %1193 = vmatprep.subr.mxu0 0.0
        %1194 = vmatpush1.msra.mxu0 0.0
        %1195 = vmatprep.subr.mxu0 0.0
        %1196 = vmatpush1.msra.mxu0 0.0
        %1197 = vmatprep.subr.mxu0 0.0
        %1198 = vmatpush1.msra.mxu0 0.0
        %1199 = vmatprep.subr.mxu0 0.0
        %1200 = vmatpush1.msra.mxu0 0.0
        %1201 = vmatprep.subr.mxu0 0.0
        %1202 = vmatpush1.msra.mxu0 0.0
        %1203 = vmatprep.subr.mxu0 0.0
        %1204 = vmatpush1.msra.mxu0 0.0
        %1205 = vmatprep.subr.mxu0 0.0
        %1206 = vmatpush1.msra.mxu0 %v783
        %1207 = vmatprep.subr.mxu0 0.0
        %1208 = vmatpush1.msra.mxu0 %v686
        %1209 = vmatprep.subr.mxu0 0.0
        %1210 = vmatpush2.msra.mxu0 0.0
        %1211 = vmatprep.subr.mxu0 0.0
        %1212 = vmatpush2.msra.mxu0 0.0
        %1213 = vmatprep.subr.mxu0 0.0
        %1214 = vmatpush2.msra.mxu0 0.0
        %1215 = vmatprep.subr.mxu0 0.0
        %1216 = vmatpush2.msra.mxu0 0.0
        %1217 = vmatprep.subr.mxu0 0.0
        %1218 = vmatpush2.msra.mxu0 0.0
        %1219 = vmatprep.subr.mxu0 0.0
        %1220 = vmatpush2.msra.mxu0 0.0
        %1221 = vmatprep.subr.mxu0 0.0
        %1222 = vmatpush2.msra.mxu0 0.0
        %1223 = vmatprep.subr.mxu0 0.0
        %1224 = vmatpush2.msra.mxu0 0.0
        %1225 = vmatprep.subr.mxu0 0.0
        %1226 = vmatpush2.msra.mxu0 0.0
        %1227 = vmatprep.subr.mxu0 0.0
        %1228 = vmatpush2.msra.mxu0 0.0
        %1229 = vmatprep.subr.mxu0 0.0
        %1230 = vmatpush2.msra.mxu0 0.0
        %1231 = vmatprep.subr.mxu0 0.0
        %1232 = vmatpush2.msra.mxu0 0.0
        %1233 = vmatprep.subr.mxu0 0.0
        %1234 = vmatpush2.msra.mxu0 0.0
        %1235 = vmatprep.subr.mxu0 0.0
        %1236 = vmatpush2.msra.mxu0 0.0
        %1237 = vmatprep.subr.mxu0 0.0
        %1238 = vmatpush2.msra.mxu0 0.0
        %1239 = vmatprep.subr.mxu0 0.0
        %1240 = vmatpush2.msra.mxu0 0.0
        %1241 = vmatprep.mubr.f32.mxu0 0.0
        %1242 = vmatmul.mubr.f32.gmra.mxu0 %v1130
        %v1243 = vpop.f32.mrf.mxu0
        %v1244 = vadd.f32 0.0, %v1243
        %v1245 = vpop.f32.mrf.mxu0
        %1246 = vmatprep.mubr.f32.mxu0 0.0
        %1247 = vmatmul.mubr.f32.gmra.mxu0 %v1133
        %v1248 = vpop.f32.mrf.mxu0
        %v1249 = vadd.f32 0.0, %v1248
        %v1250 = vpop.f32.mrf.mxu0
        %1251 = vmatprep.mubr.f32.mxu0 0.0
        %1252 = vmatmul.mubr.f32.gmra.mxu0 %v1136
        %v1253 = vpop.f32.mrf.mxu0
        %v1254 = vadd.f32 0.0, %v1253
        %v1255 = vpop.f32.mrf.mxu0
        %1256 = vmatprep.mubr.f32.mxu0 0.0
        %1257 = vmatmul.mubr.f32.gmra.mxu0 %v1139
        %v1258 = vpop.f32.mrf.mxu0
        %v1259 = vadd.f32 0.0, %v1258
        %v1260 = vpop.f32.mrf.mxu0
        %1261 = vmatprep.mubr.f32.mxu0 0.0
        %1262 = vmatmul.mubr.f32.gmra.mxu0 %v1142
        %v1263 = vpop.f32.mrf.mxu0
        %v1264 = vadd.f32 0.0, %v1263
        %v1265 = vpop.f32.mrf.mxu0
        %1266 = vmatprep.mubr.f32.mxu0 0.0
        %1267 = vmatmul.mubr.f32.gmra.mxu0 %v1145
        %v1268 = vpop.f32.mrf.mxu0
        %v1269 = vadd.f32 0.0, %v1268
        %v1270 = vpop.f32.mrf.mxu0
        %1271 = vmatprep.mubr.f32.mxu0 0.0
        %1272 = vmatmul.mubr.f32.gmra.mxu0 %v1148
        %v1273 = vpop.f32.mrf.mxu0
        %v1274 = vadd.f32 0.0, %v1273
        %v1275 = vpop.f32.mrf.mxu0
        %1276 = vmatprep.mubr.f32.mxu0 0.0
        %1277 = vmatmul.mubr.f32.gmra.mxu0 %v1151
        %v1278 = vpop.f32.mrf.mxu0
        %v1279 = vadd.f32 0.0, %v1278
        %v1280 = vpop.f32.mrf.mxu0
        %1281 = vmatprep.mubr.f32.mxu0 0.0
        %1282 = vmatmul.mubr.f32.gmra.mxu0 %v1154
        %v1283 = vpop.f32.mrf.mxu0
        %v1284 = vadd.f32 0.0, %v1283
        %v1285 = vpop.f32.mrf.mxu0
        %1286 = vmatprep.mubr.f32.mxu0 0.0
        %1287 = vmatmul.mubr.f32.gmra.mxu0 %v1157
        %v1288 = vpop.f32.mrf.mxu0
        %v1289 = vadd.f32 0.0, %v1288
        %v1290 = vpop.f32.mrf.mxu0
        %1291 = vmatprep.mubr.f32.mxu0 0.0
        %1292 = vmatmul.mubr.f32.gmra.mxu0 %v1160
        %v1293 = vpop.f32.mrf.mxu0
        %v1294 = vadd.f32 0.0, %v1293
        %v1295 = vpop.f32.mrf.mxu0
        %1296 = vmatprep.mubr.f32.mxu0 0.0
        %1297 = vmatmul.mubr.f32.gmra.mxu0 %v1163
        %v1298 = vpop.f32.mrf.mxu0
        %v1299 = vadd.f32 0.0, %v1298
        %v1300 = vpop.f32.mrf.mxu0
        %1301 = vmatprep.mubr.f32.mxu0 0.0
        %1302 = vmatmul.mubr.f32.gmra.mxu0 %v1166
        %v1303 = vpop.f32.mrf.mxu0
        %v1304 = vadd.f32 0.0, %v1303
        %v1305 = vpop.f32.mrf.mxu0
        %1306 = vmatprep.mubr.f32.mxu0 0.0
        %1307 = vmatmul.mubr.f32.gmra.mxu0 %v1169
        %v1308 = vpop.f32.mrf.mxu0
        %v1309 = vadd.f32 0.0, %v1308
        %v1310 = vpop.f32.mrf.mxu0
        %1311 = vmatprep.mubr.f32.mxu0 0.0
        %1312 = vmatmul.mubr.f32.gmra.mxu0 %v1172
        %v1313 = vpop.f32.mrf.mxu0
        %v1314 = vadd.f32 0.0, %v1313
        %v1315 = vpop.f32.mrf.mxu0
        %1316 = vmatprep.mubr.f32.mxu0 0.0
        %1317 = vmatmul.mubr.f32.gmra.mxu0 %v1175
        %v1318 = vpop.f32.mrf.mxu0
        %v1319 = vadd.f32 0.0, %v1318
        %v1320 = vpop.f32.mrf.mxu0
        %1321 = vdwg.mxu0
        %1322 = vmax.xlane.f32.xlu0 %v1244
        %v1323 = vpop.xlane.xlu0 %1322
        %1324 = vmax.xlane.f32.xlu0 %v1249
        %v1325 = vpop.xlane.xlu0 %1324
        %1326 = vmax.xlane.f32.xlu0 %v1254
        %v1327 = vpop.xlane.xlu0 %1326
        %1328 = vmax.xlane.f32.xlu0 %v1259
        %v1329 = vpop.xlane.xlu0 %1328
        %1330 = vmax.xlane.f32.xlu0 %v1264
        %v1331 = vpop.xlane.xlu0 %1330
        %1332 = vmax.xlane.f32.xlu0 %v1269
        %v1333 = vpop.xlane.xlu0 %1332
        %1334 = vmax.xlane.f32.xlu0 %v1274
        %v1335 = vpop.xlane.xlu0 %1334
        %1336 = vmax.xlane.f32.xlu0 %v1279
        %v1337 = vpop.xlane.xlu0 %1336
        %1338 = vmax.xlane.f32.xlu0 %v1284
        %v1339 = vpop.xlane.xlu0 %1338
        %1340 = vmax.xlane.f32.xlu0 %v1289
        %v1341 = vpop.xlane.xlu0 %1340
        %1342 = vmax.xlane.f32.xlu0 %v1294
        %v1343 = vpop.xlane.xlu0 %1342
        %1344 = vmax.xlane.f32.xlu0 %v1299
        %v1345 = vpop.xlane.xlu0 %1344
        %1346 = vmax.xlane.f32.xlu0 %v1304
        %v1347 = vpop.xlane.xlu0 %1346
        %1348 = vmax.xlane.f32.xlu0 %v1309
        %v1349 = vpop.xlane.xlu0 %1348
        %1350 = vmax.xlane.f32.xlu0 %v1314
        %v1351 = vpop.xlane.xlu0 %1350
        %1352 = vmax.xlane.f32.xlu0 %v1319
        %v1353 = vpop.xlane.xlu0 %1352
        %v1354 = vsub.f32 %v1244, %v1323
        %v1355 = vsub.f32 %v1249, %v1325
        %v1356 = vsub.f32 %v1254, %v1327
        %v1357 = vsub.f32 %v1259, %v1329
        %v1358 = vsub.f32 %v1264, %v1331
        %v1359 = vsub.f32 %v1269, %v1333
        %v1360 = vsub.f32 %v1274, %v1335
        %v1361 = vsub.f32 %v1279, %v1337
        %v1362 = vsub.f32 %v1284, %v1339
        %v1363 = vsub.f32 %v1289, %v1341
        %v1364 = vsub.f32 %v1294, %v1343
        %v1365 = vsub.f32 %v1299, %v1345
        %v1366 = vsub.f32 %v1304, %v1347
        %v1367 = vsub.f32 %v1309, %v1349
        %v1368 = vsub.f32 %v1314, %v1351
        %v1369 = vsub.f32 %v1319, %v1353
        %v1370 = vmul.f32 %v1354, 1.442695
        %v1371 = vpow.pop %v1370
        %v1372 = vmul.f32 %v1355, 1.442695
        %v1373 = vpow.pop %v1372
        %v1374 = vmul.f32 %v1356, 1.442695
        %v1375 = vpow.pop %v1374
        %v1376 = vmul.f32 %v1357, 1.442695
        %v1377 = vpow.pop %v1376
        %v1378 = vmul.f32 %v1358, 1.442695
        %v1379 = vpow.pop %v1378
        %v1380 = vmul.f32 %v1359, 1.442695
        %v1381 = vpow.pop %v1380
        %v1382 = vmul.f32 %v1360, 1.442695
        %v1383 = vpow.pop %v1382
        %v1384 = vmul.f32 %v1361, 1.442695
        %v1385 = vpow.pop %v1384
        %v1386 = vmul.f32 %v1362, 1.442695
        %v1387 = vpow.pop %v1386
        %v1388 = vmul.f32 %v1363, 1.442695
        %v1389 = vpow.pop %v1388
        %v1390 = vmul.f32 %v1364, 1.442695
        %v1391 = vpow.pop %v1390
        %v1392 = vmul.f32 %v1365, 1.442695
        %v1393 = vpow.pop %v1392
        %v1394 = vmul.f32 %v1366, 1.442695
        %v1395 = vpow.pop %v1394
        %v1396 = vmul.f32 %v1367, 1.442695
        %v1397 = vpow.pop %v1396
        %v1398 = vmul.f32 %v1368, 1.442695
        %v1399 = vpow.pop %v1398
        %v1400 = vmul.f32 %v1369, 1.442695
        %v1401 = vpow.pop %v1400
        %v1402 = vmul.f32 %v696, %v1013
        %1403 = vmatprep.subr.mxu0 0.0
        %1404 = vmatpush1.xpose.msra.mxu0 %v1401
        %1405 = vmatprep.subr.mxu0 0.0
        %1406 = vmatpush1.xpose.msra.mxu0 %v1399
        %1407 = vmatprep.subr.mxu0 0.0
        %1408 = vmatpush1.xpose.msra.mxu0 %v1397
        %1409 = vmatprep.subr.mxu0 0.0
        %1410 = vmatpush1.xpose.msra.mxu0 %v1395
        %1411 = vmatprep.subr.mxu0 0.0
        %1412 = vmatpush1.xpose.msra.mxu0 %v1393
        %1413 = vmatprep.subr.mxu0 0.0
        %1414 = vmatpush1.xpose.msra.mxu0 %v1391
        %1415 = vmatprep.subr.mxu0 0.0
        %1416 = vmatpush1.xpose.msra.mxu0 %v1389
        %1417 = vmatprep.subr.mxu0 0.0
        %1418 = vmatpush1.xpose.msra.mxu0 %v1387
        %1419 = vmatprep.subr.mxu0 0.0
        %1420 = vmatpush1.xpose.msra.mxu0 %v1385
        %1421 = vmatprep.subr.mxu0 0.0
        %1422 = vmatpush1.xpose.msra.mxu0 %v1383
        %1423 = vmatprep.subr.mxu0 0.0
        %1424 = vmatpush1.xpose.msra.mxu0 %v1381
        %1425 = vmatprep.subr.mxu0 0.0
        %1426 = vmatpush1.xpose.msra.mxu0 %v1379
        %1427 = vmatprep.subr.mxu0 0.0
        %1428 = vmatpush1.xpose.msra.mxu0 %v1377
        %1429 = vmatprep.subr.mxu0 0.0
        %1430 = vmatpush1.xpose.msra.mxu0 %v1375
        %1431 = vmatprep.subr.mxu0 0.0
        %1432 = vmatpush1.xpose.msra.mxu0 %v1373
        %1433 = vmatprep.subr.mxu0 0.0
        %1434 = vmatpush1.xpose.msra.mxu0 %v1371
        %1435 = vmatprep.subr.mxu0 0.0
        %1436 = vmatpush2.xpose.msra.mxu0 0.0
        %1437 = vmatprep.subr.mxu0 0.0
        %1438 = vmatpush2.xpose.msra.mxu0 0.0
        %1439 = vmatprep.subr.mxu0 0.0
        %1440 = vmatpush2.xpose.msra.mxu0 0.0
        %1441 = vmatprep.subr.mxu0 0.0
        %1442 = vmatpush2.xpose.msra.mxu0 0.0
        %1443 = vmatprep.subr.mxu0 0.0
        %1444 = vmatpush2.xpose.msra.mxu0 0.0
        %1445 = vmatprep.subr.mxu0 0.0
        %1446 = vmatpush2.xpose.msra.mxu0 0.0
        %1447 = vmatprep.subr.mxu0 0.0
        %1448 = vmatpush2.xpose.msra.mxu0 0.0
        %1449 = vmatprep.subr.mxu0 0.0
        %1450 = vmatpush2.xpose.msra.mxu0 0.0
        %1451 = vmatprep.subr.mxu0 0.0
        %1452 = vmatpush2.xpose.msra.mxu0 0.0
        %1453 = vmatprep.subr.mxu0 0.0
        %1454 = vmatpush2.xpose.msra.mxu0 0.0
        %1455 = vmatprep.subr.mxu0 0.0
        %1456 = vmatpush2.xpose.msra.mxu0 0.0
        %1457 = vmatprep.subr.mxu0 0.0
        %1458 = vmatpush2.xpose.msra.mxu0 0.0
        %1459 = vmatprep.subr.mxu0 0.0
        %1460 = vmatpush2.xpose.msra.mxu0 0.0
        %1461 = vmatprep.subr.mxu0 0.0
        %1462 = vmatpush2.xpose.msra.mxu0 0.0
        %1463 = vmatprep.subr.mxu0 0.0
        %1464 = vmatpush2.xpose.msra.mxu0 0.0
        %1465 = vmatprep.subr.mxu0 0.0
        %1466 = vmatpush2.xpose.msra.mxu0 0.0
        %1467 = vmatprep.mubr.f32.mxu0 0.0
        %1468 = vmatmul.mubr.f32.gmra.mxu0 %v1402
        %v1469 = vpop.f32.mrf.mxu0
        %v1470 = vadd.f32 0.0, %v1469
        %v1471 = vpop.f32.mrf.mxu0
        %1472 = vmatprep.mubr.f32.mxu0 0.0
        %1473 = vmatmul.mubr.f32.gmra.mxu0 1.0
        %v1474 = vpop.f32.mrf.mxu0
        %v1475 = vadd.f32 0.0, %v1474
        %v1476 = vpop.f32.mrf.mxu0
        %1477 = vdwg.mxu0
        %v1478 = vrcp.pop %v1475
        %v1479 = vlaneseq
        %v1480 = vshrl.u32 %v1479, 7
        %v1481 = vsub.s32 0, %v1480
        %v1482 = vrot.slane %v1478, %v1481
        %v1483 = vmul.f32 %v1470, %v1482
        %v1484 = vmax.f32 %v1483, 0.0
        %v1485 = vld [vmem:[%s8] sm:$0xff]
        %v1486 = vld [vmem:[%s8 + $0x8] sm:$0xff]
        %v1487 = vld [vmem:[%s9] sm:$0xff]
        %v1488 = vld [vmem:[%s9 + $0x8] sm:$0xff]
        %1490 = vset.pattern.permute.xlu0 0
        %1491 = vperm.xlu0 %1490, %v1487
        %v1492 = vpop.permute.xlu0 %1491
        %1495 = vset.pattern.permute.xlu0 0
        %1496 = vperm.xlu0 %1495, %v1488
        %v1497 = vpop.permute.xlu0 %1496
        %v1500 = vsel %vm492, %v1485, 0
        %v1503 = vsel %vm492, %v1486, 0
        %1505 = vmatprep.subr.mxu0 0.0
        %1506 = vmatpush1.msra.mxu0 0.0
        %1507 = vmatprep.subr.mxu0 0.0
        %1508 = vmatpush1.msra.mxu0 0.0
        %1509 = vmatprep.subr.mxu0 0.0
        %1510 = vmatpush1.msra.mxu0 0.0
        %1511 = vmatprep.subr.mxu0 0.0
        %1512 = vmatpush1.msra.mxu0 0.0
        %1513 = vmatprep.subr.mxu0 0.0
        %1514 = vmatpush1.msra.mxu0 0.0
        %1515 = vmatprep.subr.mxu0 0.0
        %1516 = vmatpush1.msra.mxu0 0.0
        %1517 = vmatprep.subr.mxu0 0.0
        %1518 = vmatpush1.msra.mxu0 0.0
        %1519 = vmatprep.subr.mxu0 0.0
        %1520 = vmatpush1.msra.mxu0 0.0
        %1521 = vmatprep.subr.mxu0 0.0
        %1522 = vmatpush1.msra.mxu0 0.0
        %1523 = vmatprep.subr.mxu0 0.0
        %1524 = vmatpush1.msra.mxu0 0.0
        %1525 = vmatprep.subr.mxu0 0.0
        %1526 = vmatpush1.msra.mxu0 0.0
        %1527 = vmatprep.subr.mxu0 0.0
        %1528 = vmatpush1.msra.mxu0 0.0
        %1529 = vmatprep.subr.mxu0 0.0
        %1530 = vmatpush1.msra.mxu0 0.0
        %1531 = vmatprep.subr.mxu0 0.0
        %1532 = vmatpush1.msra.mxu0 0.0
        %1533 = vmatprep.subr.mxu0 0.0
        %1534 = vmatpush1.msra.mxu0 %v1484
        %1535 = vmatprep.subr.mxu0 0.0
        %1536 = vmatpush1.msra.mxu0 %v1096
        %1537 = vmatprep.subr.mxu0 0.0
        %1538 = vmatpush2.msra.mxu0 0.0
        %1539 = vmatprep.subr.mxu0 0.0
        %1540 = vmatpush2.msra.mxu0 0.0
        %1541 = vmatprep.subr.mxu0 0.0
        %1542 = vmatpush2.msra.mxu0 0.0
        %1543 = vmatprep.subr.mxu0 0.0
        %1544 = vmatpush2.msra.mxu0 0.0
        %1545 = vmatprep.subr.mxu0 0.0
        %1546 = vmatpush2.msra.mxu0 0.0
        %1547 = vmatprep.subr.mxu0 0.0
        %1548 = vmatpush2.msra.mxu0 0.0
        %1549 = vmatprep.subr.mxu0 0.0
        %1550 = vmatpush2.msra.mxu0 0.0
        %1551 = vmatprep.subr.mxu0 0.0
        %1552 = vmatpush2.msra.mxu0 0.0
        %1553 = vmatprep.subr.mxu0 0.0
        %1554 = vmatpush2.msra.mxu0 0.0
        %1555 = vmatprep.subr.mxu0 0.0
        %1556 = vmatpush2.msra.mxu0 0.0
        %1557 = vmatprep.subr.mxu0 0.0
        %1558 = vmatpush2.msra.mxu0 0.0
        %1559 = vmatprep.subr.mxu0 0.0
        %1560 = vmatpush2.msra.mxu0 0.0
        %1561 = vmatprep.subr.mxu0 0.0
        %1562 = vmatpush2.msra.mxu0 0.0
        %1563 = vmatprep.subr.mxu0 0.0
        %1564 = vmatpush2.msra.mxu0 0.0
        %1565 = vmatprep.subr.mxu0 0.0
        %1566 = vmatpush2.msra.mxu0 0.0
        %1567 = vmatprep.subr.mxu0 0.0
        %1568 = vmatpush2.msra.mxu0 0.0
        %1569 = vmatprep.mubr.f32.mxu0 0.0
        %1570 = vmatmul.mubr.f32.gmra.mxu0 %v1500
        %v1571 = vpop.f32.mrf.mxu0
        %v1572 = vadd.f32 %v1492, %v1571
        %v1573 = vpop.f32.mrf.mxu0
        %1574 = vmatprep.mubr.f32.mxu0 0.0
        %1575 = vmatmul.mubr.f32.gmra.mxu0 %v1503
        %v1576 = vpop.f32.mrf.mxu0
        %v1577 = vadd.f32 %v1497, %v1576
        %v1578 = vpop.f32.mrf.mxu0
        %1579 = vdwg.mxu0
        %v1581 = vlaneseq
        %v1582 = vshrl.u32 %v1581, 7
        %v1583 = vsub.s32 0, %v1582
        %v1584 = vrot.slane %v477, %v1583
        %v1586 = vmul.f32 %v1572, %v1584
        %v1587 = vmul.f32 %v1577, %v1584
        %v1588 = vld [vmem:[%s10] sm:$0xff]
        %v1589 = vld [vmem:[%s10 + $0x8] sm:$0xff]
        %1591 = vset.pattern.permute.xlu0 0
        %1592 = vperm.xlu0 %1591, %v1588
        %v1593 = vpop.permute.xlu0 %1592
        %1596 = vset.pattern.permute.xlu0 0
        %1597 = vperm.xlu0 %1596, %v1589
        %v1598 = vpop.permute.xlu0 %1597
        %v1600 = vadd.f32 %v1586, %v1593
        %v1601 = vadd.f32 %v1587, %v1598
        %1602 = vst [vmem:[%s448] sm:$0xff] %v1600
        %1603 = vst [vmem:[%s448 + $0x8] sm:$0xff] %v1601
        %s1604 = sand.u32 %s302, 1
        %s1605 = scalar_lea.sflag [#allocation3], %s1604
        %s1606 = sand.u32 %s302, 1
        %s1607 = smul.addr %s1606, 16
        %s1608 = scalar_lea.vmem [#allocation2], %s1607
        // Predicated region
        $region65: #{tpu_custom_call.1} parent=63 // pred_check
          %p1609 = pneg %p312
        $region66: #{tpu_custom_call.1} parent=63 // pred_check_branch
          %1611 = sbr.rel (%p1609) target = $region68
        $region67: #{tpu_custom_call.1} parent=63 // pred_region
          %s1613 = ssub.s32 256, 256
          %1614 = vsyncadd %s1605, %s1613
          %s1615 = smul.addr %s29, 2
          %s1616 = sadd.s32 %s30, %s1615
          %s1617 = smul.addr %s1616, 128
          %s1618 = scalar_lea.hbm %s11, %s1617
          %s1619 = sshll.u32 %s1608, 4
          %s1620 = int_to_ptr.vmem [resolvable:$true] %s1619
          %1625 = dma.vmem_to_hbm [thread:$0]  %s1620, 256, %s1618, %s1605, 128, 128, 8
        $region68: #{tpu_custom_call.1} parent=63 // pred_fallthru
          _
      $region64: #{tpu_custom_call.1} parent=5 // pred_fallthru
        _
      %p1626 = scmp.le.s32.totalorder 2, %s20
      // Predicated region
      $region69: #{tpu_custom_call.1} parent=5 // pred_check
        %p1627 = pneg %p1626
      $region70: #{tpu_custom_call.1} parent=5 // pred_check_branch
        %1629 = sbr.rel (%p1627) target = $region72
      $region71: #{tpu_custom_call.1} parent=5 // pred_region
        %s1630 = ssub.s32 %s20, 2
        // Predicated region
        $region73: #{tpu_custom_call.1} parent=71 // pred_check
          %p1631 = pneg %p318
        $region74: #{tpu_custom_call.1} parent=71 // pred_check_branch
          %1633 = sbr.rel (%p1631) target = $region76
        $region75: #{tpu_custom_call.1} parent=71 // pred_region
          %s1634 = sand.u32 %s303, 1
          %s1635 = scalar_lea.sflag [#allocation3], %s1634
          %s1636 = sand.u32 %s303, 1
          %s1637 = smul.addr %s1636, 16
          %s1638 = scalar_lea.vmem [#allocation2], %s1637
          %1639 = dma.done %s1635, 256
        $region76: #{tpu_custom_call.1} parent=71 // pred_fallthru
          _
      $region72: #{tpu_custom_call.1} parent=5 // pred_fallthru
        _
    $region6: #{tpu_custom_call.1} parent=1 // loop_footer
      %s24 = sadd.s32 1, %s20
    $region7: #{tpu_custom_call.1} parent=1 // loop_footer_branch
      %19 = sbr.rel target = $region3
    $region8: #{tpu_custom_call.1} parent=1 // loop_exit
      _
    %1640 = vsyncpa [#allocation3], 1
    %s1641 = scalar_lea.sflag [#allocation3], 1
    %1642 = vsyncpa %s1641, 1

</llo_original>
